<compile_context>
chip_gen: v7x
topology: tpu7x:2x2x1
jax: 0.10.0
libtpu: 0.0.40
codegen_flags: <defaults>
</compile_context>

<pallas_src>
import functools

import numpy as np
import jax
import jax.numpy as jnp
from jax.experimental import pallas as pl
from jax.experimental.pallas import tpu as pltpu


# ----------------------------- Pallas kernel -----------------------------

def _criterion_kernel(src_ref, tgt_ref, k_ref, pref_ref, qref_ref,
                      focal_ref, dice_ref, isref_ref, accf_ref, accd_ref,
                      *, alpha, inv_px, inv_num_masks, eos_coef, inv_bs, n_valid_px):
    """One grid step processes a block of NB matched masks (lane-dense layout).

    src:  [NB, Pin]   bf16 mask logits, Pin = pad128(Hs*Ws)  (padded masks = -100)
    tgt:  [NB, Pout]  int8 binary targets, Pout = pad128(Ht*Wt) (padding = 0)
    k:    [Pin, Pout] bf16 Kronecker bilinear interpolation matrix (zero-padded)
    pref: [2, bs, Q]  f32 is_referred logits (class-major)
    qref: [bs, 1]     i32 referred query index per frame
    outputs: three (1, 1) f32 scalars (SMEM)
    accf/accd: VMEM f32 [NB, 1] per-mask partial accumulators (focal rows / dice).
    """
    i = pl.program_id(0)
    nsteps = pl.num_programs(0)

    @pl.when(i == 0)
    def _init_and_is_referred():
        accf_ref[...] = jnp.zeros_like(accf_ref)
        accd_ref[...] = jnp.zeros_like(accd_ref)
        # ---- loss_is_referred: tiny, fused here so it costs no extra launch/DMA ----
        l0 = pref_ref[0]                               # [bs, Q] class-0 ('referred') logits
        l1 = pref_ref[1]                               # [bs, Q] class-1 ('not referred') logits
        m = jnp.maximum(l0, l1)
        lse = m + jnp.log(jnp.exp(l0 - m) + jnp.exp(l1 - m))
        q_iota = jax.lax.broadcasted_iota(jnp.int32, l0.shape, 1)
        ref_mask = q_iota == qref_ref[...]             # [bs, 1] broadcast -> [bs, Q]
        nll = jnp.where(ref_mask, lse - l0, lse - l1)  # -log_softmax of the target class
        w = jnp.where(ref_mask, 1.0, eos_coef)
        # Reference normalizes by bs (= T*B) only, not bs*Q.
        isref_ref[0, 0] = jnp.sum(nll * w) * inv_bs

    # ---- bilinear upsample (align_corners=False) as ONE lane-dense MXU matmul:
    #      [NB, Pin] @ [Pin, Pout] -> [NB, Pout] f32 (Pin maps onto the MXU contraction). ----
    up = jnp.dot(src_ref[...], k_ref[...], preferred_element_type=jnp.float32)
    t = tgt_ref[...].astype(jnp.float32)

    # ---- sigmoid-focal + dice, fully vectorized over the lane-dense block ----
    # Per-pixel transcendental budget: 1 exp + 1 log + 1 reciprocal (EUP is the likely
    # binding slot once lanes are dense); everything else is VPU work which has slack.
    e = jnp.exp(-jnp.abs(up))
    ce = jnp.maximum(up, 0.0) - up * t + jnp.log(1.0 + e)     # stable BCE-with-logits
    r = pl.reciprocal(1.0 + e, approx=False)
    prob = jnp.where(up >= 0.0, r, e * r)                     # sigmoid(up)
    p_t = prob * t + (1.0 - prob) * (1.0 - t)
    one_m = 1.0 - p_t
    alpha_t = alpha * t + (1.0 - alpha) * (1.0 - t)
    focal = alpha_t * ce * one_m * one_m                      # gamma = 2

    P = up.shape[-1]
    if n_valid_px != P:
        # static: mask padded pixel lanes (up=0 there would otherwise contribute
        # log(2)*0.75*0.25 to focal and 0.5 to the dice denominator)
        lane = jax.lax.broadcasted_iota(jnp.int32, (1, P), 1)
        valid = (lane < n_valid_px).astype(jnp.float32)
        focal = focal * valid
        prob = prob * valid

    # per-mask partials: two lane reductions (inter and prob+t folded) + focal row sums.
    # Accumulate the [NB, 1] vectors; the cross-sublane reduce + SMEM write is deferred
    # to the finalize step so it is off every grid step's critical path.
    accf_ref[...] = accf_ref[...] + jnp.sum(focal, axis=-1, keepdims=True)
    inter = jnp.sum(prob * t, axis=-1, keepdims=True)
    s = jnp.sum(prob + t, axis=-1, keepdims=True)
    accd_ref[...] = accd_ref[...] + (1.0 - (2.0 * inter + 1.0) / (s + 1.0))

    @pl.when(i == nsteps - 1)
    def _finalize():
        focal_ref[0, 0] = jnp.sum(accf_ref[...]) * (inv_px * inv_num_masks)
        dice_ref[0, 0] = jnp.sum(accd_ref[...]) * inv_num_masks


# ----------------------------- kernel wrapper -----------------------------

def _bilinear_matrix(out_size, in_size):
    """PyTorch F.interpolate(mode='bilinear', align_corners=False) as a dense matrix."""
    scale = in_size / out_size
    d = np.arange(out_size, dtype=np.float64)
    src = np.maximum((d + 0.5) * scale - 0.5, 0.0)
    i0 = np.minimum(np.floor(src).astype(np.int64), in_size - 1)
    i1 = np.minimum(i0 + 1, in_size - 1)
    w1 = src - i0
    w0 = 1.0 - w1
    M = np.zeros((out_size, in_size), dtype=np.float32)
    M[np.arange(out_size), i0] += w0.astype(np.float32)
    M[np.arange(out_size), i1] += w1.astype(np.float32)
    return M


def _pick_mask_block(n_masks, p_in, p_out):
    """Mask-block size (multiple of 32 for int8 sublane tiling) + consistent VMEM limit."""
    try:
        cap = pltpu.get_tpu_info().vmem_capacity_bytes
    except Exception:
        cap = 64 * 1024 * 1024                         # smallest in the fleet (v7x per-TC)
    vmem_limit = (cap * 5) // 8                        # ~40 MiB on v7x, ~80 MiB on v5e/v6e
    kron_bytes = 2 * p_in * p_out                      # bf16 interpolation matrix
    # per-mask bytes: double-buffered bf16 src + int8 tgt blocks, plus ~6 f32 temporaries
    per_mask = 2 * 2 * p_in + 2 * p_out + 6 * 4 * p_out
    budget = vmem_limit - 2 * kron_bytes - (4 << 20)   # headroom for compiler temporaries
    nb = max(32, (budget // max(per_mask, 1)) // 32 * 32)
    nb = min(nb, 2048)                                 # fewer, fatter steps (0.35us/step)
    nb = min(nb, max(32, -(-n_masks // 32) * 32))      # never larger than the padded count
    return int(nb), int(vmem_limit)


def criterion_losses_pallas(src_masks, target_masks, pred_is_referred,
                            query_referred_indices, num_masks, eos_coef, alpha=0.25):
    """Fused SetCriterion losses: (loss_sigmoid_focal, loss_dice, loss_is_referred)."""
    N, Hs, Ws = src_masks.shape
    _, Ht, Wt = target_masks.shape
    bs, Q, _ = pred_is_referred.shape

    p_in_raw, p_out_raw = Hs * Ws, Ht * Wt
    p_in = -(-p_in_raw // 128) * 128
    p_out = -(-p_out_raw // 128) * 128

    # Kronecker bilinear interpolation matrix (compile-time numpy), zero-padded.
    ah = _bilinear_matrix(Ht, Hs)                      # [Ht, Hs]
    aw = _bilinear_matrix(Wt, Ws)                      # [Wt, Ws]
    kron = np.kron(ah, aw).T                           # [Hs*Ws, Ht*Wt]
    # TODO(synk): for large masks where kron exceeds ~8 MiB, switch to the separable
    # fallback (W-matmul -> XLU transpose -> one big H-matmul) instead of this matrix.
    kron = np.pad(kron, ((0, p_in - p_in_raw), (0, p_out - p_out_raw)))
    k_bf16 = jnp.asarray(kron, dtype=jnp.bfloat16)

    # Lane-dense flattened inputs: bf16 logits (MXU-native), int8 binary targets
    # (halves the larger DMA stream; targets never touch the MXU).
    src = src_masks.reshape(N, p_in_raw).astype(jnp.bfloat16)
    tgt = target_masks.reshape(N, p_out_raw).astype(jnp.int8)   # binary {0,1} masks
    if p_in > p_in_raw:
        src = jnp.pad(src, ((0, 0), (0, p_in - p_in_raw)))
    if p_out > p_out_raw:
        tgt = jnp.pad(tgt, ((0, 0), (0, p_out - p_out_raw)))

    nb, vmem_limit = _pick_mask_block(N, p_in, p_out)
    n_pad = -(-N // nb) * nb
    if n_pad > N:
        # padded masks: logits of -100 with empty targets contribute ~0 to both losses
        src = jnp.pad(src, ((0, n_pad - N), (0, 0)), constant_values=-100.0)
        tgt = jnp.pad(tgt, ((0, n_pad - N), (0, 0)))

    pref = jnp.moveaxis(pred_is_referred.astype(jnp.float32), -1, 0)    # [2, bs, Q]
    qref = jnp.asarray(query_referred_indices, dtype=jnp.int32).reshape(bs, 1)

    kernel = functools.partial(
        _criterion_kernel,
        alpha=float(alpha),
        inv_px=1.0 / float(p_out_raw),
        inv_num_masks=1.0 / float(num_masks),
        eos_coef=float(eos_coef),
        inv_bs=1.0 / float(bs),
        n_valid_px=int(p_out_raw))

    smem = pltpu.MemorySpace.SMEM
    focal, dice, isref = pl.pallas_call(
        kernel,
        grid=(n_pad // nb,),
        in_specs=[
            pl.BlockSpec((nb, p_in), lambda i: (i, 0)),
            pl.BlockSpec((nb, p_out), lambda i: (i, 0)),
            pl.BlockSpec((p_in, p_out), lambda i: (0, 0)),
            pl.BlockSpec((2, bs, Q), lambda i: (0, 0, 0)),
            pl.BlockSpec((bs, 1), lambda i: (0, 0)),
        ],
        out_specs=(
            pl.BlockSpec(memory_space=smem),
            pl.BlockSpec(memory_space=smem),
            pl.BlockSpec(memory_space=smem),
        ),
        out_shape=(
            jax.ShapeDtypeStruct((1, 1), jnp.float32),
            jax.ShapeDtypeStruct((1, 1), jnp.float32),
            jax.ShapeDtypeStruct((1, 1), jnp.float32),
        ),
        scratch_shapes=[pltpu.VMEM((nb, 1), jnp.float32),
                        pltpu.VMEM((nb, 1), jnp.float32)],
        # TODO(synk): on v7x (2 TCs) the mask axis could be "parallel" with per-block
        # partial VMEM outputs reduced in XLA; the grid is usually 1-2 steps here so the
        # serial "arbitrary"+accumulate form is kept for simplicity.
        compiler_params=pltpu.CompilerParams(
            dimension_semantics=("arbitrary",),
            vmem_limit_bytes=vmem_limit),
    )(src, tgt, k_bf16, pref, qref)
    return focal[0, 0], dice[0, 0], isref[0, 0]


# ----------------------------- criterion (JAX) -----------------------------

def flatten_temporal_batch_dims(outputs, targets):
    out = {}
    for k, v in outputs.items():
        if isinstance(v, jax.Array):
            out[k] = v.reshape((-1,) + v.shape[2:])            # flatten(0, 1)
        else:
            out[k] = [i for step_t in v for i in step_t]
    targets = [frame_t_target for step_t in targets for frame_t_target in step_t]
    return out, targets


class FixedMatcher:
    """Deterministic stand-in for the Hungarian matcher: returns one
    (query_indices, target_indices) pair per batch element."""
    # TODO(synk): the real Hungarian matcher (scipy linear_sum_assignment over a
    # dice/focal cost matrix) has no clean Pallas equivalent; indices are supplied here.
    def __init__(self, indices):
        self.indices = indices

    def __call__(self, outputs, targets):
        return list(self.indices)


class SetCriterion:
    def __init__(self, matcher, weight_dict, eos_coef):
        self.matcher = matcher
        self.weight_dict = weight_dict
        self.eos_coef = eos_coef
        losses_to_compute = []
        if weight_dict['loss_dice'] > 0 or weight_dict['loss_sigmoid_focal'] > 0:
            losses_to_compute.append('masks')
        if weight_dict['loss_is_referred'] > 0:
            losses_to_compute.append('is_referred')
        self.losses = losses_to_compute

    def __call__(self, outputs, targets):
        outputs = dict(outputs)
        aux_outputs_list = outputs.pop('aux_outputs', None)
        losses = self.compute_criterion(outputs, targets, self.losses)
        if aux_outputs_list is not None:
            aux_losses_to_compute = list(self.losses)
            for i, aux_outputs in enumerate(aux_outputs_list):
                d = self.compute_criterion(aux_outputs, targets, aux_losses_to_compute)
                losses.update({k + f'_{i}': v for k, v in d.items()})
        return losses

    def compute_criterion(self, outputs, targets, losses_to_compute):
        indices = self.matcher(outputs, targets)
        T = len(targets)
        outputs, targets = flatten_temporal_batch_dims(outputs, targets)
        indices = T * indices
        num_masks = sum(len(t['masks']) for t in targets)
        # TODO(synk): torch.distributed all_reduce / world-size division omitted (single host).
        num_masks = max(float(num_masks), 1.0)

        losses = {}
        if 'masks' in losses_to_compute:
            # One fused pallas_call computes focal + dice (+ is_referred, nearly free).
            src_masks, target_masks = self._gather_matched_masks(outputs, targets, indices)
            qref = self._get_query_referred_indices(indices, targets)
            focal, dice, isref = criterion_losses_pallas(
                src_masks, target_masks, outputs['pred_is_referred'], qref,
                num_masks=num_masks, eos_coef=self.eos_coef)
            losses['loss_sigmoid_focal'] = focal
            losses['loss_dice'] = dice
            if 'is_referred' in losses_to_compute:
                losses['loss_is_referred'] = isref
        elif 'is_referred' in losses_to_compute:
            # This loss alone is too small to justify a pallas_call.
            losses['loss_is_referred'] = self._loss_is_referred_jax(outputs, targets, indices)
        return losses

    def _gather_matched_masks(self, outputs, targets, indices):
        assert 'pred_masks' in outputs
        b_src, src_idx = self._get_src_permutation_idx(indices)
        b_tgt, tgt_idx = self._get_tgt_permutation_idx(indices)
        src_masks = outputs['pred_masks'][b_src, src_idx]                # [N, Hs, Ws]
        # all target masks share a shape -> nested_tensor padding is a no-op (plain stack)
        target_masks = jnp.stack([t['masks'] for t in targets])         # [T*B, Ninst, Ht, Wt]
        target_masks = target_masks[b_tgt, tgt_idx]                      # [N, Ht, Wt]
        return src_masks, target_masks

    def _loss_is_referred_jax(self, outputs, targets, indices):
        # (no 'is_ref_inst_visible' key in targets -> takes the arange(bs) branch)
        pred = outputs['pred_is_referred'].astype(jnp.float32)           # [T*B, Q, 2]
        bs, Q, _ = pred.shape
        qref = jnp.asarray(self._get_query_referred_indices(indices, targets), jnp.int32)
        logp = jax.nn.log_softmax(pred, axis=-1)
        ref_mask = jax.lax.broadcasted_iota(jnp.int32, (bs, Q), 1) == qref[:, None]
        nll = jnp.where(ref_mask, -logp[..., 0], -logp[..., 1])
        w = jnp.where(ref_mask, 1.0, self.eos_coef)
        return jnp.sum(nll * w) / float(len(indices))

    @staticmethod
    def _get_src_permutation_idx(indices):
        batch_idx = np.concatenate([np.full_like(src, i) for i, (src, _) in enumerate(indices)])
        src_idx = np.concatenate([src for src, _ in indices])
        return batch_idx, src_idx

    @staticmethod
    def _get_tgt_permutation_idx(indices):
        batch_idx = np.concatenate([np.full_like(tgt, i) for i, (_, tgt) in enumerate(indices)])
        tgt_idx = np.concatenate([tgt for _, tgt in indices])
        return batch_idx, tgt_idx

    @staticmethod
    def _get_query_referred_indices(indices, targets):
        query_referred_indices = []
        for (query_idxs, target_idxs), target in zip(indices, targets):
            sel = np.where(np.asarray(target_idxs) == int(target['referred_instance_idx']))[0]
            query_referred_indices.append(np.asarray(query_idxs)[sel])
        return np.concatenate(query_referred_indices)


# ----------------------------- demo -----------------------------

if __name__ == "__main__":
    T, B, Q = 2, 2, 8          # time steps, batch, object queries
    Hs, Ws = 16, 16            # predicted mask resolution
    Ht, Wt = 32, 32            # ground-truth mask resolution
    Ninst = 2                  # instances per frame

    key = jax.random.PRNGKey(0)
    k1, k2, k3 = jax.random.split(key, 3)
    pred_masks = jax.random.normal(k1, (T, B, Q, Hs, Ws), dtype=jnp.float32)
    pred_is_referred = jax.random.normal(k2, (T, B, Q, 2), dtype=jnp.float32)
    tgt_bits = jax.random.bernoulli(k3, 0.3, (T, B, Ninst, Ht, Wt)).astype(jnp.float32)

    targets = []
    for t in range(T):
        step = []
        for b in range(B):
            step.append({'masks': tgt_bits[t, b],
                         'referred_instance_idx': (t + b) % Ninst})
        targets.append(step)

    outputs = {'pred_masks': pred_masks, 'pred_is_referred': pred_is_referred}

    matcher_indices = [
        (np.array([1, 4], dtype=np.int64), np.array([0, 1], dtype=np.int64)),
        (np.array([6, 2], dtype=np.int64), np.array([1, 0], dtype=np.int64)),
    ]
    matcher = FixedMatcher(matcher_indices)
    weight_dict = {'loss_is_referred': 2.0, 'loss_dice': 5.0, 'loss_sigmoid_focal': 2.0}

    criterion = SetCriterion(matcher, weight_dict, eos_coef=0.1)
    losses = criterion(outputs, targets)
    losses = {k: jax.block_until_ready(v) for k, v in losses.items()}
    print("KERNEL_OK")
</pallas_src>

<mosaic_0001>
module attributes {stable_mosaic.version = 11 : i64} {
  func.func @_criterion_kernel(%arg0: i32, %arg1: memref<32x256xbf16, #tpu.memory_space<vmem>>, %arg2: memref<32x1024xi8, #tpu.memory_space<vmem>>, %arg3: memref<256x1024xbf16, #tpu.memory_space<vmem>>, %arg4: memref<2x4x8xf32, #tpu.memory_space<vmem>>, %arg5: memref<4x1xi32, #tpu.memory_space<vmem>>, %arg6: memref<1x1xf32, #tpu.memory_space<smem>>, %arg7: memref<1x1xf32, #tpu.memory_space<smem>>, %arg8: memref<1x1xf32, #tpu.memory_space<smem>>, %arg9: memref<32x1xf32, #tpu.memory_space<vmem>>, %arg10: memref<32x1xf32, #tpu.memory_space<vmem>>) attributes {dimension_semantics = [#tpu.dimension_semantics<arbitrary>], iteration_bounds = array<i64: 1>, scalar_prefetch = 0 : i64, scratch_operands = 2 : i64, tpu.core_type = #tpu.core_type<tc>, window_params = [{transform_indices = @transform_0, window_bounds = array<i64: 32, 256>}, {transform_indices = @transform_1, window_bounds = array<i64: 32, 1024>}, {pipeline_mode = #tpu.pipeline_mode<synchronous>, transform_indices = @transform_2, window_bounds = array<i64: 256, 1024>}, {pipeline_mode = #tpu.pipeline_mode<synchronous>, transform_indices = @transform_3, window_bounds = array<i64: 2, 4, 8>}, {pipeline_mode = #tpu.pipeline_mode<synchronous>, transform_indices = @transform_4, window_bounds = array<i64: 4, 1>}, {transform_indices = @transform_5, window_bounds = array<i64: 1, 1>}, {transform_indices = @transform_6, window_bounds = array<i64: 1, 1>}, {transform_indices = @transform_7, window_bounds = array<i64: 1, 1>}]} {
    %c0_i32 = arith.constant 0 : i32
    %0 = arith.cmpi eq, %arg0, %c0_i32 : i32
    %1 = arith.extui %0 : i1 to i32
    %c0_i32_0 = arith.constant 0 : i32
    %2 = arith.cmpi ne, %1, %c0_i32_0 : i32
    scf.if %2 {
      %cst_34 = arith.constant 0.000000e+00 : f32
      %72 = vector.broadcast %cst_34 : f32 to vector<32x1xf32>
      %c0_35 = arith.constant 0 : index
      %c0_36 = arith.constant 0 : index
      %73 = vector.load %arg9[%c0_35, %c0_36] : memref<32x1xf32, #tpu.memory_space<vmem>>, vector<32x1xf32>
      tpu.vector_store %arg9[%c0_35, %c0_36], %72 {strides = array<i32>} : memref<32x1xf32, #tpu.memory_space<vmem>>, vector<32x1xf32>,
      %cst_37 = arith.constant 0.000000e+00 : f32
      %74 = vector.broadcast %cst_37 : f32 to vector<32x1xf32>
      %c0_38 = arith.constant 0 : index
      %c0_39 = arith.constant 0 : index
      %75 = vector.load %arg10[%c0_38, %c0_39] : memref<32x1xf32, #tpu.memory_space<vmem>>, vector<32x1xf32>
      tpu.vector_store %arg10[%c0_38, %c0_39], %74 {strides = array<i32>} : memref<32x1xf32, #tpu.memory_space<vmem>>, vector<32x1xf32>,
      %c0_40 = arith.constant 0 : index
      %c0_41 = arith.constant 0 : index
      %c0_42 = arith.constant 0 : index
      %76 = vector.load %arg4[%c0_40, %c0_41, %c0_42] : memref<2x4x8xf32, #tpu.memory_space<vmem>>, vector<1x4x8xf32>
      %77 = vector.shape_cast %76 : vector<1x4x8xf32> to vector<4x8xf32>
      %c1 = arith.constant 1 : index
      %c0_43 = arith.constant 0 : index
      %c0_44 = arith.constant 0 : index
      %78 = vector.load %arg4[%c1, %c0_43, %c0_44] : memref<2x4x8xf32, #tpu.memory_space<vmem>>, vector<1x4x8xf32>
      %79 = vector.shape_cast %78 : vector<1x4x8xf32> to vector<4x8xf32>
      %80 = arith.maximumf %77, %79 : vector<4x8xf32>
      %81 = arith.subf %77, %80 : vector<4x8xf32>
      %82 = math.exp %81 : vector<4x8xf32>
      %83 = arith.subf %79, %80 : vector<4x8xf32>
      %84 = math.exp %83 : vector<4x8xf32>
      %85 = arith.addf %82, %84 : vector<4x8xf32>
      %86 = math.log %85 : vector<4x8xf32>
      %87 = arith.addf %80, %86 : vector<4x8xf32>
      %88 = tpu.iota {dimensions = array<i32: 1>} : vector<4x8xi32>
      %c0_45 = arith.constant 0 : index
      %c0_46 = arith.constant 0 : index
      %89 = vector.load %arg5[%c0_45, %c0_46] : memref<4x1xi32, #tpu.memory_space<vmem>>, vector<4x1xi32>
      %90 = vector.broadcast %89 : vector<4x1xi32> to vector<4x8xi32>
      %91 = arith.cmpi eq, %88, %90 : vector<4x8xi32>
      %92 = arith.subf %87, %77 : vector<4x8xf32>
      %93 = arith.subf %87, %79 : vector<4x8xf32>
      %94 = arith.select %91, %92, %93 : vector<4x8xi1>, vector<4x8xf32>
      %cst_47 = arith.constant 1.000000e+00 : f32
      %cst_48 = arith.constant 1.000000e-01 : f32
      %95 = vector.broadcast %cst_47 : f32 to vector<4x8xf32>
      %96 = vector.broadcast %cst_48 : f32 to vector<4x8xf32>
      %97 = arith.select %91, %95, %96 : vector<4x8xi1>, vector<4x8xf32>
      %98 = arith.mulf %94, %97 : vector<4x8xf32>
      %99 = vector.shape_cast %98 : vector<4x8xf32> to vector<1x4x8xf32>
      %cst_49 = arith.constant dense<0.000000e+00> : vector<1xf32>
      %100 = vector.multi_reduction <add>, %99, %cst_49 [1, 2] : vector<1x4x8xf32> to vector<1xf32>
      %101 = vector.shape_cast %100 : vector<1xf32> to vector<1x1x1xf32>
      %102 = vector.extract %101[0, 0, 0] : f32 from vector<1x1x1xf32>
      %cst_50 = arith.constant 2.500000e-01 : f32
      %103 = arith.mulf %102, %cst_50 : f32
      %c0_51 = arith.constant 0 : index
      %c0_52 = arith.constant 0 : index
      %104 = memref.load %arg8[%c0_51, %c0_52] : memref<1x1xf32, #tpu.memory_space<smem>>
      memref.store %103, %arg8[%c0_51, %c0_52] : memref<1x1xf32, #tpu.memory_space<smem>>
    } else {
    }
    %c0 = arith.constant 0 : index
    %c0_1 = arith.constant 0 : index
    %3 = vector.load %arg1[%c0, %c0_1] : memref<32x256xbf16, #tpu.memory_space<vmem>>, vector<32x256xbf16>
    %c0_2 = arith.constant 0 : index
    %c0_3 = arith.constant 0 : index
    %4 = vector.load %arg3[%c0_2, %c0_3] : memref<256x1024xbf16, #tpu.memory_space<vmem>>, vector<256x1024xbf16>
    %cst = arith.constant dense<0.000000e+00> : vector<32x1024xf32>
    %5 = tpu.matmul %3, %4, %cst {dimension_numbers = #tpu.dot_dimension_numbers<[1], [0], [0], [1], [0, 0, 1, 1], [], []>} : vector<32x256xbf16>, vector<256x1024xbf16>, vector<32x1024xf32> -> vector<32x1024xf32>
    %c0_4 = arith.constant 0 : index
    %c0_5 = arith.constant 0 : index
    %6 = vector.load %arg2[%c0_4, %c0_5] : memref<32x1024xi8, #tpu.memory_space<vmem>>, vector<32x1024xi8>
    %7 = arith.sitofp %6 : vector<32x1024xi8> to vector<32x1024xf32>
    %8 = math.absf %5 : vector<32x1024xf32>
    %cst_6 = arith.constant 0.000000e+00 : f32
    %9 = vector.broadcast %cst_6 : f32 to vector<32x1024xf32>
    %10 = arith.subf %9, %8 : vector<32x1024xf32>
    %11 = math.exp %10 : vector<32x1024xf32>
    %cst_7 = arith.constant 0.000000e+00 : f32
    %12 = vector.broadcast %cst_7 : f32 to vector<32x1024xf32>
    %13 = arith.maximumf %5, %12 : vector<32x1024xf32>
    %14 = arith.mulf %5, %7 : vector<32x1024xf32>
    %15 = arith.subf %13, %14 : vector<32x1024xf32>
    %cst_8 = arith.constant 1.000000e+00 : f32
    %16 = vector.broadcast %cst_8 : f32 to vector<32x1024xf32>
    %17 = arith.addf %16, %11 : vector<32x1024xf32>
    %18 = math.log %17 : vector<32x1024xf32>
    %19 = arith.addf %15, %18 : vector<32x1024xf32>
    %cst_9 = arith.constant 1.000000e+00 : f32
    %20 = vector.broadcast %cst_9 : f32 to vector<32x1024xf32>
    %21 = arith.addf %20, %11 : vector<32x1024xf32>
    %22 = tpu.reciprocal %21 : vector<32x1024xf32> -> vector<32x1024xf32>
    %cst_10 = arith.constant 0.000000e+00 : f32
    %23 = vector.broadcast %cst_10 : f32 to vector<32x1024xf32>
    %24 = arith.cmpf oge, %5, %23 : vector<32x1024xf32>
    %25 = arith.mulf %11, %22 : vector<32x1024xf32>
    %26 = arith.select %24, %22, %25 : vector<32x1024xi1>, vector<32x1024xf32>
    %27 = arith.mulf %26, %7 : vector<32x1024xf32>
    %cst_11 = arith.constant 1.000000e+00 : f32
    %28 = vector.broadcast %cst_11 : f32 to vector<32x1024xf32>
    %29 = arith.subf %28, %26 : vector<32x1024xf32>
    %cst_12 = arith.constant 1.000000e+00 : f32
    %30 = vector.broadcast %cst_12 : f32 to vector<32x1024xf32>
    %31 = arith.subf %30, %7 : vector<32x1024xf32>
    %32 = arith.mulf %29, %31 : vector<32x1024xf32>
    %33 = arith.addf %27, %32 : vector<32x1024xf32>
    %cst_13 = arith.constant 1.000000e+00 : f32
    %34 = vector.broadcast %cst_13 : f32 to vector<32x1024xf32>
    %35 = arith.subf %34, %33 : vector<32x1024xf32>
    %cst_14 = arith.constant 2.500000e-01 : f32
    %36 = vector.broadcast %cst_14 : f32 to vector<32x1024xf32>
    %37 = arith.mulf %36, %7 : vector<32x1024xf32>
    %cst_15 = arith.constant 1.000000e+00 : f32
    %38 = vector.broadcast %cst_15 : f32 to vector<32x1024xf32>
    %39 = arith.subf %38, %7 : vector<32x1024xf32>
    %cst_16 = arith.constant 7.500000e-01 : f32
    %40 = vector.broadcast %cst_16 : f32 to vector<32x1024xf32>
    %41 = arith.mulf %40, %39 : vector<32x1024xf32>
    %42 = arith.addf %37, %41 : vector<32x1024xf32>
    %43 = arith.mulf %42, %19 : vector<32x1024xf32>
    %44 = arith.mulf %43, %35 : vector<32x1024xf32>
    %45 = arith.mulf %44, %35 : vector<32x1024xf32>
    %c0_17 = arith.constant 0 : index
    %c0_18 = arith.constant 0 : index
    %46 = vector.load %arg9[%c0_17, %c0_18] : memref<32x1xf32, #tpu.memory_space<vmem>>, vector<32x1xf32>
    %cst_19 = arith.constant dense<0.000000e+00> : vector<32xf32>
    %47 = vector.multi_reduction <add>, %45, %cst_19 [1] : vector<32x1024xf32> to vector<32xf32>
    %48 = vector.shape_cast %47 : vector<32xf32> to vector<32x1xf32>
    %49 = arith.addf %46, %48 : vector<32x1xf32>
    %c0_20 = arith.constant 0 : index
    %c0_21 = arith.constant 0 : index
    %50 = vector.load %arg9[%c0_20, %c0_21] : memref<32x1xf32, #tpu.memory_space<vmem>>, vector<32x1xf32>
    tpu.vector_store %arg9[%c0_20, %c0_21], %49 {strides = array<i32>} : memref<32x1xf32, #tpu.memory_space<vmem>>, vector<32x1xf32>,
    %51 = arith.mulf %26, %7 : vector<32x1024xf32>
    %cst_22 = arith.constant dense<0.000000e+00> : vector<32xf32>
    %52 = vector.multi_reduction <add>, %51, %cst_22 [1] : vector<32x1024xf32> to vector<32xf32>
    %53 = vector.shape_cast %52 : vector<32xf32> to vector<32x1xf32>
    %54 = arith.addf %26, %7 : vector<32x1024xf32>
    %cst_23 = arith.constant dense<0.000000e+00> : vector<32xf32>
    %55 = vector.multi_reduction <add>, %54, %cst_23 [1] : vector<32x1024xf32> to vector<32xf32>
    %56 = vector.shape_cast %55 : vector<32xf32> to vector<32x1xf32>
    %c0_24 = arith.constant 0 : index
    %c0_25 = arith.constant 0 : index
    %57 = vector.load %arg10[%c0_24, %c0_25] : memref<32x1xf32, #tpu.memory_space<vmem>>, vector<32x1xf32>
    %cst_26 = arith.constant 2.000000e+00 : f32
    %58 = vector.broadcast %cst_26 : f32 to vector<32x1xf32>
    %59 = arith.mulf %58, %53 : vector<32x1xf32>
    %cst_27 = arith.constant 1.000000e+00 : f32
    %60 = vector.broadcast %cst_27 : f32 to vector<32x1xf32>
    %61 = arith.addf %59, %60 : vector<32x1xf32>
    %cst_28 = arith.constant 1.000000e+00 : f32
    %62 = vector.broadcast %cst_28 : f32 to vector<32x1xf32>
    %63 = arith.addf %56, %62 : vector<32x1xf32>
    %64 = arith.divf %61, %63 : vector<32x1xf32>
    %cst_29 = arith.constant 1.000000e+00 : f32
    %65 = vector.broadcast %cst_29 : f32 to vector<32x1xf32>
    %66 = arith.subf %65, %64 : vector<32x1xf32>
    %67 = arith.addf %57, %66 : vector<32x1xf32>
    %c0_30 = arith.constant 0 : index
    %c0_31 = arith.constant 0 : index
    %68 = vector.load %arg10[%c0_30, %c0_31] : memref<32x1xf32, #tpu.memory_space<vmem>>, vector<32x1xf32>
    tpu.vector_store %arg10[%c0_30, %c0_31], %67 {strides = array<i32>} : memref<32x1xf32, #tpu.memory_space<vmem>>, vector<32x1xf32>,
    %c0_i32_32 = arith.constant 0 : i32
    %69 = arith.cmpi eq, %arg0, %c0_i32_32 : i32
    %70 = arith.extui %69 : i1 to i32
    %c0_i32_33 = arith.constant 0 : i32
    %71 = arith.cmpi ne, %70, %c0_i32_33 : i32
    scf.if %71 {
      %c0_34 = arith.constant 0 : index
      %c0_35 = arith.constant 0 : index
      %72 = vector.load %arg9[%c0_34, %c0_35] : memref<32x1xf32, #tpu.memory_space<vmem>>, vector<32x1xf32>
      %73 = vector.shape_cast %72 : vector<32x1xf32> to vector<1x32x1xf32>
      %cst_36 = arith.constant dense<0.000000e+00> : vector<1xf32>
      %74 = vector.multi_reduction <add>, %73, %cst_36 [1, 2] : vector<1x32x1xf32> to vector<1xf32>
      %75 = vector.shape_cast %74 : vector<1xf32> to vector<1x1x1xf32>
      %76 = vector.extract %75[0, 0, 0] : f32 from vector<1x1x1xf32>
      %cst_37 = arith.constant 1.22070313E-4 : f32
      %77 = arith.mulf %76, %cst_37 : f32
      %c0_38 = arith.constant 0 : index
      %c0_39 = arith.constant 0 : index
      %78 = memref.load %arg6[%c0_38, %c0_39] : memref<1x1xf32, #tpu.memory_space<smem>>
      memref.store %77, %arg6[%c0_38, %c0_39] : memref<1x1xf32, #tpu.memory_space<smem>>
      %c0_40 = arith.constant 0 : index
      %c0_41 = arith.constant 0 : index
      %79 = vector.load %arg10[%c0_40, %c0_41] : memref<32x1xf32, #tpu.memory_space<vmem>>, vector<32x1xf32>
      %80 = vector.shape_cast %79 : vector<32x1xf32> to vector<1x32x1xf32>
      %cst_42 = arith.constant dense<0.000000e+00> : vector<1xf32>
      %81 = vector.multi_reduction <add>, %80, %cst_42 [1, 2] : vector<1x32x1xf32> to vector<1xf32>
      %82 = vector.shape_cast %81 : vector<1xf32> to vector<1x1x1xf32>
      %83 = vector.extract %82[0, 0, 0] : f32 from vector<1x1x1xf32>
      %cst_43 = arith.constant 1.250000e-01 : f32
      %84 = arith.mulf %83, %cst_43 : f32
      %c0_44 = arith.constant 0 : index
      %c0_45 = arith.constant 0 : index
      %85 = memref.load %arg7[%c0_44, %c0_45] : memref<1x1xf32, #tpu.memory_space<smem>>
      memref.store %84, %arg7[%c0_44, %c0_45] : memref<1x1xf32, #tpu.memory_space<smem>>
    } else {
    }
    return
  }
  func.func @transform_0(%arg0: i32) -> (i32, i32) {
    %c0_i32 = arith.constant 0 : i32
    %c0_i32_0 = arith.constant 0 : i32
    return %arg0, %c0_i32 : i32, i32
  }
  func.func @transform_1(%arg0: i32) -> (i32, i32) {
    %c0_i32 = arith.constant 0 : i32
    %c0_i32_0 = arith.constant 0 : i32
    return %arg0, %c0_i32 : i32, i32
  }
  func.func @transform_2(%arg0: i32) -> (i32, i32) {
    %c0_i32 = arith.constant 0 : i32
    %c0_i32_0 = arith.constant 0 : i32
    %c0_i32_1 = arith.constant 0 : i32
    return %c0_i32, %c0_i32_0 : i32, i32
  }
  func.func @transform_3(%arg0: i32) -> (i32, i32, i32) {
    %c0_i32 = arith.constant 0 : i32
    %c0_i32_0 = arith.constant 0 : i32
    %c0_i32_1 = arith.constant 0 : i32
    %c0_i32_2 = arith.constant 0 : i32
    return %c0_i32, %c0_i32_0, %c0_i32_1 : i32, i32, i32
  }
  func.func @transform_4(%arg0: i32) -> (i32, i32) {
    %c0_i32 = arith.constant 0 : i32
    %c0_i32_0 = arith.constant 0 : i32
    %c0_i32_1 = arith.constant 0 : i32
    return %c0_i32, %c0_i32_0 : i32, i32
  }
  func.func @transform_5(%arg0: i32) -> (i32, i32) {
    %c0_i32 = arith.constant 0 : i32
    %c0_i32_0 = arith.constant 0 : i32
    %c0_i32_1 = arith.constant 0 : i32
    return %c0_i32, %c0_i32_0 : i32, i32
  }
  func.func @transform_6(%arg0: i32) -> (i32, i32) {
    %c0_i32 = arith.constant 0 : i32
    %c0_i32_0 = arith.constant 0 : i32
    %c0_i32_1 = arith.constant 0 : i32
    return %c0_i32, %c0_i32_0 : i32, i32
  }
  func.func @transform_7(%arg0: i32) -> (i32, i32) {
    %c0_i32 = arith.constant 0 : i32
    %c0_i32_0 = arith.constant 0 : i32
    %c0_i32_1 = arith.constant 0 : i32
    return %c0_i32, %c0_i32_0 : i32, i32
  }
}

</mosaic_0001>

<llo_original>
// kernel: tpu_custom_call.1
$region0: #{tpu_custom_call.1}
  #allocation0 [shape = 'u32[]', space=smem, size = 0x4, offset = 0x4, fixed_abs, tag = 'smem constant byte address 0x4 - core index']
  #allocation1 [shape = 'u32[144,128]{1,0:T(1,128)}', space=vmem, size = 0x12000, scoped, tag = 'internal scratch']
  #allocation2 [shape = 'f32[32,1]{1,0:T(8,128)}', space=vmem, size = 0x4000, scoped, tag = 'scratch operand']
  #allocation3 [shape = 'f32[32,1]{1,0:T(8,128)}', space=vmem, size = 0x4000, scoped, tag = 'scratch operand']
  %s0 = inlined_call_operand.hbm [shape: bf16[32,256], index: 0, kind: input, shape index: {}]
  %s1 = inlined_call_operand.hbm [shape: s8[32,1024], index: 1, kind: input, shape index: {}]
  %s2 = inlined_call_operand.hbm [shape: bf16[256,1024], index: 2, kind: input, shape index: {}]
  %s3 = inlined_call_operand.vmem [shape: f32[2,4,8], index: 3, kind: input, shape index: {}]
  %s4 = inlined_call_operand.vmem [shape: s32[4,1], index: 4, kind: input, shape index: {}]
  %s5 = inlined_call_operand.hbm [shape: f32[1,1], index: 5, kind: output, shape index: {0}]
  %s6 = inlined_call_operand.hbm [shape: f32[1,1], index: 6, kind: output, shape index: {1}]
  %s7 = inlined_call_operand.hbm [shape: f32[1,1], index: 7, kind: output, shape index: {2}]
  %8 = xla_tuple %s5, %s6, %s7
  %s9 = sld [smem:[#allocation0]]
  $region66: #{tpu_custom_call.1} parent=0
    _
  %s11 = ssub.s32 1, %s9
  %s12 = scalar_select 0, %s11, %s9
  $region1: #{tpu_custom_call.1} parent=0
    #allocation4 [shape = 'u8[16384]{0}', space=vmem, size = 0x4000, scoped, tag = 'input window, operand 0, single buffered']
    #allocation5 [shape = 's32[1]{0}', space=sflag, size = 0x4, scoped, tag = 'scoped memory for tpu_custom_call.1']
    #allocation6 [shape = 's32[1]{0}', space=sflag, size = 0x4, scoped, tag = 'scoped memory for tpu_custom_call.1']
    #allocation7 [shape = 'u8[32768]{0}', space=vmem, size = 0x8000, scoped, tag = 'input window, operand 1, single buffered']
    #allocation8 [shape = 's32[1]{0}', space=sflag, size = 0x4, scoped, tag = 'scoped memory for tpu_custom_call.1']
    #allocation9 [shape = 'u8[524288]{0}', space=vmem, size = 0x80000, scoped, tag = 'input window, operand 2, single buffered']
    #allocation10 [shape = 'u8[512]{0}', space=smem, size = 0x200, scoped, tag = 'output window, operand 0, single buffered']
    #allocation11 [shape = 'u8[512]{0}', space=smem, size = 0x200, scoped, tag = 'output window, operand 1, single buffered']
    #allocation12 [shape = 's32[1]{0}', space=sflag, size = 0x4, scoped, tag = 'scoped memory for tpu_custom_call.1']
    #allocation13 [shape = 'u8[512]{0}', space=smem, size = 0x200, scoped, tag = 'output window, operand 2, single buffered']
    %13 = vsyncpa [#allocation5], 0
    %14 = vsyncpa [#allocation8], 0
    %15 = vsyncpa [#allocation6], 0
    %16 = vsyncpa [#allocation12], 0
    // Predicated region
    $region2: #{tpu_custom_call.1} parent=1 // pred_check
      _
    $region3: #{tpu_custom_call.1} parent=1 // pred_check_branch
      %18 = sbr.rel (0) target = $region5
    $region4: #{tpu_custom_call.1} parent=1 // pred_region
      %s20 = ssub.s32 512, 512
      %21 = vsyncadd [#allocation5], %s20
      %s22 = sshll.u32 [#allocation4], 4
      %s23 = int_to_ptr.vmem [resolvable:$true] %s22
      %28 = dma.hbm_to_vmem [thread:$0]  %s0, 512, %s23, [#allocation5], 128, 128, 8
    $region5: #{tpu_custom_call.1} parent=1 // pred_fallthru
      _
    // Predicated region
    $region6: #{tpu_custom_call.1} parent=1 // pred_check
      _
    $region7: #{tpu_custom_call.1} parent=1 // pred_check_branch
      %30 = sbr.rel (0) target = $region9
    $region8: #{tpu_custom_call.1} parent=1 // pred_region
      %s32 = ssub.s32 1024, 1024
      %33 = vsyncadd [#allocation8], %s32
      %s35 = sshll.u32 [#allocation7], 4
      %s36 = int_to_ptr.vmem [resolvable:$true] %s35
      %38 = dma.hbm_to_vmem [thread:$0]  %s1, 1024, %s36, [#allocation8]
    $region9: #{tpu_custom_call.1} parent=1 // pred_fallthru
      _
    // Predicated region
    $region10: #{tpu_custom_call.1} parent=1 // pred_check
      _
    $region11: #{tpu_custom_call.1} parent=1 // pred_check_branch
      %40 = sbr.rel (0) target = $region13
    $region12: #{tpu_custom_call.1} parent=1 // pred_region
      %s42 = ssub.s32 16384, 16384
      %43 = vsyncadd [#allocation8], %s42
      %s44 = sshll.u32 [#allocation9], 4
      %s45 = int_to_ptr.vmem [resolvable:$true] %s44
      %50 = dma.hbm_to_vmem [thread:$0]  %s2, 16384, %s45, [#allocation8], 512, 512, 32
    $region13: #{tpu_custom_call.1} parent=1 // pred_fallthru
      _
    // Predicated region
    $region14: #{tpu_custom_call.1} parent=1 // pred_check
      _
    $region15: #{tpu_custom_call.1} parent=1 // pred_check_branch
      %52 = sbr.rel (0) target = $region17
    $region16: #{tpu_custom_call.1} parent=1 // pred_region
      _
    $region17: #{tpu_custom_call.1} parent=1 // pred_fallthru
      _
    // Predicated region
    $region18: #{tpu_custom_call.1} parent=1 // pred_check
      _
    $region19: #{tpu_custom_call.1} parent=1 // pred_check_branch
      %54 = sbr.rel (0) target = $region21
    $region20: #{tpu_custom_call.1} parent=1 // pred_region
      _
    $region21: #{tpu_custom_call.1} parent=1 // pred_fallthru
      _
    // Predicated region
    $region22: #{tpu_custom_call.1} parent=1 // pred_check
      _
    $region23: #{tpu_custom_call.1} parent=1 // pred_check_branch
      %56 = sbr.rel (0) target = $region25
    $region24: #{tpu_custom_call.1} parent=1 // pred_region
      %57 = dma.done [#allocation5], 512
    $region25: #{tpu_custom_call.1} parent=1 // pred_fallthru
      _
    // Predicated region
    $region26: #{tpu_custom_call.1} parent=1 // pred_check
      _
    $region27: #{tpu_custom_call.1} parent=1 // pred_check_branch
      %59 = sbr.rel (0) target = $region29
    $region28: #{tpu_custom_call.1} parent=1 // pred_region
      %60 = dma.done [#allocation8], 1024
    $region29: #{tpu_custom_call.1} parent=1 // pred_fallthru
      _
    // Predicated region
    $region30: #{tpu_custom_call.1} parent=1 // pred_check
      _
    $region31: #{tpu_custom_call.1} parent=1 // pred_check_branch
      %62 = sbr.rel (0) target = $region33
    $region32: #{tpu_custom_call.1} parent=1 // pred_region
      %63 = dma.done [#allocation8], 16384
    $region33: #{tpu_custom_call.1} parent=1 // pred_fallthru
      _
    %p64 = scmp.eq.s32.totalorder 0, 0
    // Predicated region
    $region34: #{tpu_custom_call.1} parent=1 // pred_check
      %p65 = pneg %p64
    $region35: #{tpu_custom_call.1} parent=1 // pred_check_branch
      %67 = sbr.rel (%p65) target = $region37
    $region36: #{tpu_custom_call.1} parent=1 // pred_region
      %vm68 = vcmask 7168
      %69 = vst.msk [vmem:[#allocation2] sm:$0xff] %vm68, 0.0
      %70 = vst.msk [vmem:[#allocation2 + $0x8] sm:$0xff] %vm68, 0.0
      %71 = vst.msk [vmem:[#allocation2 + $0x10] sm:$0xff] %vm68, 0.0
      %72 = vst.msk [vmem:[#allocation2 + $0x18] sm:$0xff] %vm68, 0.0
      %73 = vst.msk [vmem:[#allocation3] sm:$0xff] %vm68, 0.0
      %74 = vst.msk [vmem:[#allocation3 + $0x8] sm:$0xff] %vm68, 0.0
      %75 = vst.msk [vmem:[#allocation3 + $0x10] sm:$0xff] %vm68, 0.0
      %76 = vst.msk [vmem:[#allocation3 + $0x18] sm:$0xff] %vm68, 0.0
      %v77 = vld [vmem:[%s3] sm:$0xf]
      %s78 = scalar_lea.vmem %s3, 4
      %v79 = vld [vmem:[%s78] sm:$0xf]
      %v80 = vmax.f32 %v77, %v79
      %v81 = vsub.f32 %v77, %v80
      %v82 = vmul.f32 %v81, 1.442695
      %v83 = vpow.pop %v82
      %v84 = vsub.f32 %v79, %v80
      %v85 = vmul.f32 %v84, 1.442695
      %v86 = vpow.pop %v85
      %v87 = vadd.f32 %v83, %v86
      %v88 = vlog2.pop %v87
      %v89 = vmul.f32 %v88, 0.6931472
      %v90 = vadd.f32 %v80, %v89
      %v91 = vlaneseq
      %v92 = vand.u32 %v91, 127
      %v93 = vld [vmem:[%s4] sm:$0xf]
      %94 = vset.pattern.permute.xlu0 0
      %95 = vperm.xlu0 %94, %v93
      %v96 = vpop.permute.xlu0 %95
      %vm97 = vcmp.eq.s32.totalorder %v92, %v96
      %v98 = vsub.f32 %v90, %v77
      %v99 = vsub.f32 %v90, %v79
      %v100 = vsel %vm97, %v98, %v99
      %v101 = vsel %vm97, 1.0, 0.1
      %v102 = vmul.f32 %v100, %v101
      %vm103 = vcmask 60416
      %v104 = vsel %vm103, %v102, 0.0
      %105 = vadd.xlane.f32.xlu0 %v104
      %v106 = vpop.xlane.xlu0 %105
      %v107 = vrot.slane %v106, 4
      %v108 = vadd.f32 %v106, %v107
      %v109 = vrot.slane %v108, 2
      %v110 = vadd.f32 %v108, %v109
      %v111 = vrot.slane %v110, 1
      %v112 = vadd.f32 %v110, %v111
      %s113 = vtos %v112
      %s114 = smul.f32 %s113, 0.25
      %s115 = scalar_lea.smem [#allocation13], 0
      %116 = sst [smem:[%s115]] %s114
    $region37: #{tpu_custom_call.1} parent=1 // pred_fallthru
      _
    %v117 = vld [vmem:[#allocation4] sm:$0xff]
    %v118 = vld [vmem:[#allocation4 + $0x8] sm:$0xff]
    %v119 = vld [vmem:[#allocation4 + $0x10] sm:$0xff]
    %v120 = vld [vmem:[#allocation4 + $0x18] sm:$0xff]
    %v121 = vld [vmem:[#allocation9] sm:$0xff]
    %v122 = vld [vmem:[#allocation9 + $0x8] sm:$0xff]
    %v123 = vld [vmem:[#allocation9 + $0x10] sm:$0xff]
    %v124 = vld [vmem:[#allocation9 + $0x18] sm:$0xff]
    %v125 = vld [vmem:[#allocation9 + $0x20] sm:$0xff]
    %v126 = vld [vmem:[#allocation9 + $0x28] sm:$0xff]
    %v127 = vld [vmem:[#allocation9 + $0x30] sm:$0xff]
    %v128 = vld [vmem:[#allocation9 + $0x38] sm:$0xff]
    %v129 = vld [vmem:[#allocation9 + $0x40] sm:$0xff]
    %v130 = vld [vmem:[#allocation9 + $0x48] sm:$0xff]
    %v131 = vld [vmem:[#allocation9 + $0x50] sm:$0xff]
    %v132 = vld [vmem:[#allocation9 + $0x58] sm:$0xff]
    %v133 = vld [vmem:[#allocation9 + $0x60] sm:$0xff]
    %v134 = vld [vmem:[#allocation9 + $0x68] sm:$0xff]
    %v135 = vld [vmem:[#allocation9 + $0x70] sm:$0xff]
    %v136 = vld [vmem:[#allocation9 + $0x78] sm:$0xff]
    %v137 = vld [vmem:[#allocation9 + $0x80] sm:$0xff]
    %v138 = vld [vmem:[#allocation9 + $0x88] sm:$0xff]
    %v139 = vld [vmem:[#allocation9 + $0x90] sm:$0xff]
    %v140 = vld [vmem:[#allocation9 + $0x98] sm:$0xff]
    %v141 = vld [vmem:[#allocation9 + $0xa0] sm:$0xff]
    %v142 = vld [vmem:[#allocation9 + $0xa8] sm:$0xff]
    %v143 = vld [vmem:[#allocation9 + $0xb0] sm:$0xff]
    %v144 = vld [vmem:[#allocation9 + $0xb8] sm:$0xff]
    %v145 = vld [vmem:[#allocation9 + $0xc0] sm:$0xff]
    %v146 = vld [vmem:[#allocation9 + $0xc8] sm:$0xff]
    %v147 = vld [vmem:[#allocation9 + $0xd0] sm:$0xff]
    %v148 = vld [vmem:[#allocation9 + $0xd8] sm:$0xff]
    %v149 = vld [vmem:[#allocation9 + $0xe0] sm:$0xff]
    %v150 = vld [vmem:[#allocation9 + $0xe8] sm:$0xff]
    %v151 = vld [vmem:[#allocation9 + $0xf0] sm:$0xff]
    %v152 = vld [vmem:[#allocation9 + $0xf8] sm:$0xff]
    %v153 = vld [vmem:[#allocation9 + $0x100] sm:$0xff]
    %v154 = vld [vmem:[#allocation9 + $0x108] sm:$0xff]
    %v155 = vld [vmem:[#allocation9 + $0x110] sm:$0xff]
    %v156 = vld [vmem:[#allocation9 + $0x118] sm:$0xff]
    %v157 = vld [vmem:[#allocation9 + $0x120] sm:$0xff]
    %v158 = vld [vmem:[#allocation9 + $0x128] sm:$0xff]
    %v159 = vld [vmem:[#allocation9 + $0x130] sm:$0xff]
    %v160 = vld [vmem:[#allocation9 + $0x138] sm:$0xff]
    %v161 = vld [vmem:[#allocation9 + $0x140] sm:$0xff]
    %v162 = vld [vmem:[#allocation9 + $0x148] sm:$0xff]
    %v163 = vld [vmem:[#allocation9 + $0x150] sm:$0xff]
    %v164 = vld [vmem:[#allocation9 + $0x158] sm:$0xff]
    %v165 = vld [vmem:[#allocation9 + $0x160] sm:$0xff]
    %v166 = vld [vmem:[#allocation9 + $0x168] sm:$0xff]
    %v167 = vld [vmem:[#allocation9 + $0x170] sm:$0xff]
    %v168 = vld [vmem:[#allocation9 + $0x178] sm:$0xff]
    %v169 = vld [vmem:[#allocation9 + $0x180] sm:$0xff]
    %v170 = vld [vmem:[#allocation9 + $0x188] sm:$0xff]
    %v171 = vld [vmem:[#allocation9 + $0x190] sm:$0xff]
    %v172 = vld [vmem:[#allocation9 + $0x198] sm:$0xff]
    %v173 = vld [vmem:[#allocation9 + $0x1a0] sm:$0xff]
    %v174 = vld [vmem:[#allocation9 + $0x1a8] sm:$0xff]
    %v175 = vld [vmem:[#allocation9 + $0x1b0] sm:$0xff]
    %v176 = vld [vmem:[#allocation9 + $0x1b8] sm:$0xff]
    %v177 = vld [vmem:[#allocation9 + $0x1c0] sm:$0xff]
    %v178 = vld [vmem:[#allocation9 + $0x1c8] sm:$0xff]
    %v179 = vld [vmem:[#allocation9 + $0x1d0] sm:$0xff]
    %v180 = vld [vmem:[#allocation9 + $0x1d8] sm:$0xff]
    %v181 = vld [vmem:[#allocation9 + $0x1e0] sm:$0xff]
    %v182 = vld [vmem:[#allocation9 + $0x1e8] sm:$0xff]
    %v183 = vld [vmem:[#allocation9 + $0x1f0] sm:$0xff]
    %v184 = vld [vmem:[#allocation9 + $0x1f8] sm:$0xff]
    %v185 = vld [vmem:[#allocation9 + $0x200] sm:$0xff]
    %v186 = vld [vmem:[#allocation9 + $0x208] sm:$0xff]
    %v187 = vld [vmem:[#allocation9 + $0x210] sm:$0xff]
    %v188 = vld [vmem:[#allocation9 + $0x218] sm:$0xff]
    %v189 = vld [vmem:[#allocation9 + $0x220] sm:$0xff]
    %v190 = vld [vmem:[#allocation9 + $0x228] sm:$0xff]
    %v191 = vld [vmem:[#allocation9 + $0x230] sm:$0xff]
    %v192 = vld [vmem:[#allocation9 + $0x238] sm:$0xff]
    %v193 = vld [vmem:[#allocation9 + $0x240] sm:$0xff]
    %v194 = vld [vmem:[#allocation9 + $0x248] sm:$0xff]
    %v195 = vld [vmem:[#allocation9 + $0x250] sm:$0xff]
    %v196 = vld [vmem:[#allocation9 + $0x258] sm:$0xff]
    %v197 = vld [vmem:[#allocation9 + $0x260] sm:$0xff]
    %v198 = vld [vmem:[#allocation9 + $0x268] sm:$0xff]
    %v199 = vld [vmem:[#allocation9 + $0x270] sm:$0xff]
    %v200 = vld [vmem:[#allocation9 + $0x278] sm:$0xff]
    %v201 = vld [vmem:[#allocation9 + $0x280] sm:$0xff]
    %v202 = vld [vmem:[#allocation9 + $0x288] sm:$0xff]
    %v203 = vld [vmem:[#allocation9 + $0x290] sm:$0xff]
    %v204 = vld [vmem:[#allocation9 + $0x298] sm:$0xff]
    %v205 = vld [vmem:[#allocation9 + $0x2a0] sm:$0xff]
    %v206 = vld [vmem:[#allocation9 + $0x2a8] sm:$0xff]
    %v207 = vld [vmem:[#allocation9 + $0x2b0] sm:$0xff]
    %v208 = vld [vmem:[#allocation9 + $0x2b8] sm:$0xff]
    %v209 = vld [vmem:[#allocation9 + $0x2c0] sm:$0xff]
    %v210 = vld [vmem:[#allocation9 + $0x2c8] sm:$0xff]
    %v211 = vld [vmem:[#allocation9 + $0x2d0] sm:$0xff]
    %v212 = vld [vmem:[#allocation9 + $0x2d8] sm:$0xff]
    %v213 = vld [vmem:[#allocation9 + $0x2e0] sm:$0xff]
    %v214 = vld [vmem:[#allocation9 + $0x2e8] sm:$0xff]
    %v215 = vld [vmem:[#allocation9 + $0x2f0] sm:$0xff]
    %v216 = vld [vmem:[#allocation9 + $0x2f8] sm:$0xff]
    %v217 = vld [vmem:[#allocation9 + $0x300] sm:$0xff]
    %v218 = vld [vmem:[#allocation9 + $0x308] sm:$0xff]
    %v219 = vld [vmem:[#allocation9 + $0x310] sm:$0xff]
    %v220 = vld [vmem:[#allocation9 + $0x318] sm:$0xff]
    %v221 = vld [vmem:[#allocation9 + $0x320] sm:$0xff]
    %v222 = vld [vmem:[#allocation9 + $0x328] sm:$0xff]
    %v223 = vld [vmem:[#allocation9 + $0x330] sm:$0xff]
    %v224 = vld [vmem:[#allocation9 + $0x338] sm:$0xff]
    %v225 = vld [vmem:[#allocation9 + $0x340] sm:$0xff]
    %v226 = vld [vmem:[#allocation9 + $0x348] sm:$0xff]
    %v227 = vld [vmem:[#allocation9 + $0x350] sm:$0xff]
    %v228 = vld [vmem:[#allocation9 + $0x358] sm:$0xff]
    %v229 = vld [vmem:[#allocation9 + $0x360] sm:$0xff]
    %v230 = vld [vmem:[#allocation9 + $0x368] sm:$0xff]
    %v231 = vld [vmem:[#allocation9 + $0x370] sm:$0xff]
    %v232 = vld [vmem:[#allocation9 + $0x378] sm:$0xff]
    %v233 = vld [vmem:[#allocation9 + $0x380] sm:$0xff]
    %v234 = vld [vmem:[#allocation9 + $0x388] sm:$0xff]
    %v235 = vld [vmem:[#allocation9 + $0x390] sm:$0xff]
    %v236 = vld [vmem:[#allocation9 + $0x398] sm:$0xff]
    %v237 = vld [vmem:[#allocation9 + $0x3a0] sm:$0xff]
    %v238 = vld [vmem:[#allocation9 + $0x3a8] sm:$0xff]
    %v239 = vld [vmem:[#allocation9 + $0x3b0] sm:$0xff]
    %v240 = vld [vmem:[#allocation9 + $0x3b8] sm:$0xff]
    %v241 = vld [vmem:[#allocation9 + $0x3c0] sm:$0xff]
    %v242 = vld [vmem:[#allocation9 + $0x3c8] sm:$0xff]
    %v243 = vld [vmem:[#allocation9 + $0x3d0] sm:$0xff]
    %v244 = vld [vmem:[#allocation9 + $0x3d8] sm:$0xff]
    %v245 = vld [vmem:[#allocation9 + $0x3e0] sm:$0xff]
    %v246 = vld [vmem:[#allocation9 + $0x3e8] sm:$0xff]
    %v247 = vld [vmem:[#allocation9 + $0x3f0] sm:$0xff]
    %v248 = vld [vmem:[#allocation9 + $0x3f8] sm:$0xff]
    %v253 = vunpack.c.l.b16 %v117
    %v254 = vunpack.c.h.b16 %v117
    %v255 = vunpack.c.l.b16 %v118
    %v256 = vunpack.c.h.b16 %v118
    %v257 = vunpack.c.l.b16 %v119
    %v258 = vunpack.c.h.b16 %v119
    %v259 = vunpack.c.l.b16 %v120
    %v260 = vunpack.c.h.b16 %v120
    %v261 = vpack.c.b16 %v255, %v253
    %v262 = vpack.c.b16 %v256, %v254
    %v263 = vpack.c.b16 %v259, %v257
    %v264 = vpack.c.b16 %v260, %v258
    %v397 = vunpack.c.l.b16 %v121
    %v398 = vunpack.c.h.b16 %v121
    %v399 = vunpack.c.l.b16 %v122
    %v400 = vunpack.c.h.b16 %v122
    %v401 = vunpack.c.l.b16 %v123
    %v402 = vunpack.c.h.b16 %v123
    %v403 = vunpack.c.l.b16 %v124
    %v404 = vunpack.c.h.b16 %v124
    %v405 = vunpack.c.l.b16 %v125
    %v406 = vunpack.c.h.b16 %v125
    %v407 = vunpack.c.l.b16 %v126
    %v408 = vunpack.c.h.b16 %v126
    %v409 = vunpack.c.l.b16 %v127
    %v410 = vunpack.c.h.b16 %v127
    %v411 = vunpack.c.l.b16 %v128
    %v412 = vunpack.c.h.b16 %v128
    %v413 = vunpack.c.l.b16 %v129
    %v414 = vunpack.c.h.b16 %v129
    %v415 = vunpack.c.l.b16 %v130
    %v416 = vunpack.c.h.b16 %v130
    %v417 = vunpack.c.l.b16 %v131
    %v418 = vunpack.c.h.b16 %v131
    %v419 = vunpack.c.l.b16 %v132
    %v420 = vunpack.c.h.b16 %v132
    %v421 = vunpack.c.l.b16 %v133
    %v422 = vunpack.c.h.b16 %v133
    %v423 = vunpack.c.l.b16 %v134
    %v424 = vunpack.c.h.b16 %v134
    %v425 = vunpack.c.l.b16 %v135
    %v426 = vunpack.c.h.b16 %v135
    %v427 = vunpack.c.l.b16 %v136
    %v428 = vunpack.c.h.b16 %v136
    %v429 = vunpack.c.l.b16 %v137
    %v430 = vunpack.c.h.b16 %v137
    %v431 = vunpack.c.l.b16 %v138
    %v432 = vunpack.c.h.b16 %v138
    %v433 = vunpack.c.l.b16 %v139
    %v434 = vunpack.c.h.b16 %v139
    %v435 = vunpack.c.l.b16 %v140
    %v436 = vunpack.c.h.b16 %v140
    %v437 = vunpack.c.l.b16 %v141
    %v438 = vunpack.c.h.b16 %v141
    %v439 = vunpack.c.l.b16 %v142
    %v440 = vunpack.c.h.b16 %v142
    %v441 = vunpack.c.l.b16 %v143
    %v442 = vunpack.c.h.b16 %v143
    %v443 = vunpack.c.l.b16 %v144
    %v444 = vunpack.c.h.b16 %v144
    %v445 = vunpack.c.l.b16 %v145
    %v446 = vunpack.c.h.b16 %v145
    %v447 = vunpack.c.l.b16 %v146
    %v448 = vunpack.c.h.b16 %v146
    %v449 = vunpack.c.l.b16 %v147
    %v450 = vunpack.c.h.b16 %v147
    %v451 = vunpack.c.l.b16 %v148
    %v452 = vunpack.c.h.b16 %v148
    %v453 = vunpack.c.l.b16 %v149
    %v454 = vunpack.c.h.b16 %v149
    %v455 = vunpack.c.l.b16 %v150
    %v456 = vunpack.c.h.b16 %v150
    %v457 = vunpack.c.l.b16 %v151
    %v458 = vunpack.c.h.b16 %v151
    %v459 = vunpack.c.l.b16 %v152
    %v460 = vunpack.c.h.b16 %v152
    %v461 = vunpack.c.l.b16 %v153
    %v462 = vunpack.c.h.b16 %v153
    %v463 = vunpack.c.l.b16 %v154
    %v464 = vunpack.c.h.b16 %v154
    %v465 = vunpack.c.l.b16 %v155
    %v466 = vunpack.c.h.b16 %v155
    %v467 = vunpack.c.l.b16 %v156
    %v468 = vunpack.c.h.b16 %v156
    %v469 = vunpack.c.l.b16 %v157
    %v470 = vunpack.c.h.b16 %v157
    %v471 = vunpack.c.l.b16 %v158
    %v472 = vunpack.c.h.b16 %v158
    %v473 = vunpack.c.l.b16 %v159
    %v474 = vunpack.c.h.b16 %v159
    %v475 = vunpack.c.l.b16 %v160
    %v476 = vunpack.c.h.b16 %v160
    %v477 = vunpack.c.l.b16 %v161
    %v478 = vunpack.c.h.b16 %v161
    %v479 = vunpack.c.l.b16 %v162
    %v480 = vunpack.c.h.b16 %v162
    %v481 = vunpack.c.l.b16 %v163
    %v482 = vunpack.c.h.b16 %v163
    %v483 = vunpack.c.l.b16 %v164
    %v484 = vunpack.c.h.b16 %v164
    %v485 = vunpack.c.l.b16 %v165
    %v486 = vunpack.c.h.b16 %v165
    %v487 = vunpack.c.l.b16 %v166
    %v488 = vunpack.c.h.b16 %v166
    %v489 = vunpack.c.l.b16 %v167
    %v490 = vunpack.c.h.b16 %v167
    %v491 = vunpack.c.l.b16 %v168
    %v492 = vunpack.c.h.b16 %v168
    %v493 = vunpack.c.l.b16 %v169
    %v494 = vunpack.c.h.b16 %v169
    %v495 = vunpack.c.l.b16 %v170
    %v496 = vunpack.c.h.b16 %v170
    %v497 = vunpack.c.l.b16 %v171
    %v498 = vunpack.c.h.b16 %v171
    %v499 = vunpack.c.l.b16 %v172
    %v500 = vunpack.c.h.b16 %v172
    %v501 = vunpack.c.l.b16 %v173
    %v502 = vunpack.c.h.b16 %v173
    %v503 = vunpack.c.l.b16 %v174
    %v504 = vunpack.c.h.b16 %v174
    %v505 = vunpack.c.l.b16 %v175
    %v506 = vunpack.c.h.b16 %v175
    %v507 = vunpack.c.l.b16 %v176
    %v508 = vunpack.c.h.b16 %v176
    %v509 = vunpack.c.l.b16 %v177
    %v510 = vunpack.c.h.b16 %v177
    %v511 = vunpack.c.l.b16 %v178
    %v512 = vunpack.c.h.b16 %v178
    %v513 = vunpack.c.l.b16 %v179
    %v514 = vunpack.c.h.b16 %v179
    %v515 = vunpack.c.l.b16 %v180
    %v516 = vunpack.c.h.b16 %v180
    %v517 = vunpack.c.l.b16 %v181
    %v518 = vunpack.c.h.b16 %v181
    %v519 = vunpack.c.l.b16 %v182
    %v520 = vunpack.c.h.b16 %v182
    %v521 = vunpack.c.l.b16 %v183
    %v522 = vunpack.c.h.b16 %v183
    %v523 = vunpack.c.l.b16 %v184
    %v524 = vunpack.c.h.b16 %v184
    %v525 = vunpack.c.l.b16 %v185
    %v526 = vunpack.c.h.b16 %v185
    %v527 = vunpack.c.l.b16 %v186
    %v528 = vunpack.c.h.b16 %v186
    %v529 = vunpack.c.l.b16 %v187
    %v530 = vunpack.c.h.b16 %v187
    %v531 = vunpack.c.l.b16 %v188
    %v532 = vunpack.c.h.b16 %v188
    %v533 = vunpack.c.l.b16 %v189
    %v534 = vunpack.c.h.b16 %v189
    %v535 = vunpack.c.l.b16 %v190
    %v536 = vunpack.c.h.b16 %v190
    %v537 = vunpack.c.l.b16 %v191
    %v538 = vunpack.c.h.b16 %v191
    %v539 = vunpack.c.l.b16 %v192
    %v540 = vunpack.c.h.b16 %v192
    %v541 = vunpack.c.l.b16 %v193
    %v542 = vunpack.c.h.b16 %v193
    %v543 = vunpack.c.l.b16 %v194
    %v544 = vunpack.c.h.b16 %v194
    %v545 = vunpack.c.l.b16 %v195
    %v546 = vunpack.c.h.b16 %v195
    %v547 = vunpack.c.l.b16 %v196
    %v548 = vunpack.c.h.b16 %v196
    %v549 = vunpack.c.l.b16 %v197
    %v550 = vunpack.c.h.b16 %v197
    %v551 = vunpack.c.l.b16 %v198
    %v552 = vunpack.c.h.b16 %v198
    %v553 = vunpack.c.l.b16 %v199
    %v554 = vunpack.c.h.b16 %v199
    %v555 = vunpack.c.l.b16 %v200
    %v556 = vunpack.c.h.b16 %v200
    %v557 = vunpack.c.l.b16 %v201
    %v558 = vunpack.c.h.b16 %v201
    %v559 = vunpack.c.l.b16 %v202
    %v560 = vunpack.c.h.b16 %v202
    %v561 = vunpack.c.l.b16 %v203
    %v562 = vunpack.c.h.b16 %v203
    %v563 = vunpack.c.l.b16 %v204
    %v564 = vunpack.c.h.b16 %v204
    %v565 = vunpack.c.l.b16 %v205
    %v566 = vunpack.c.h.b16 %v205
    %v567 = vunpack.c.l.b16 %v206
    %v568 = vunpack.c.h.b16 %v206
    %v569 = vunpack.c.l.b16 %v207
    %v570 = vunpack.c.h.b16 %v207
    %v571 = vunpack.c.l.b16 %v208
    %v572 = vunpack.c.h.b16 %v208
    %v573 = vunpack.c.l.b16 %v209
    %v574 = vunpack.c.h.b16 %v209
    %v575 = vunpack.c.l.b16 %v210
    %v576 = vunpack.c.h.b16 %v210
    %v577 = vunpack.c.l.b16 %v211
    %v578 = vunpack.c.h.b16 %v211
    %v579 = vunpack.c.l.b16 %v212
    %v580 = vunpack.c.h.b16 %v212
    %v581 = vunpack.c.l.b16 %v213
    %v582 = vunpack.c.h.b16 %v213
    %v583 = vunpack.c.l.b16 %v214
    %v584 = vunpack.c.h.b16 %v214
    %v585 = vunpack.c.l.b16 %v215
    %v586 = vunpack.c.h.b16 %v215
    %v587 = vunpack.c.l.b16 %v216
    %v588 = vunpack.c.h.b16 %v216
    %v589 = vunpack.c.l.b16 %v217
    %v590 = vunpack.c.h.b16 %v217
    %v591 = vunpack.c.l.b16 %v218
    %v592 = vunpack.c.h.b16 %v218
    %v593 = vunpack.c.l.b16 %v219
    %v594 = vunpack.c.h.b16 %v219
    %v595 = vunpack.c.l.b16 %v220
    %v596 = vunpack.c.h.b16 %v220
    %v597 = vunpack.c.l.b16 %v221
    %v598 = vunpack.c.h.b16 %v221
    %v599 = vunpack.c.l.b16 %v222
    %v600 = vunpack.c.h.b16 %v222
    %v601 = vunpack.c.l.b16 %v223
    %v602 = vunpack.c.h.b16 %v223
    %v603 = vunpack.c.l.b16 %v224
    %v604 = vunpack.c.h.b16 %v224
    %v605 = vunpack.c.l.b16 %v225
    %v606 = vunpack.c.h.b16 %v225
    %v607 = vunpack.c.l.b16 %v226
    %v608 = vunpack.c.h.b16 %v226
    %v609 = vunpack.c.l.b16 %v227
    %v610 = vunpack.c.h.b16 %v227
    %v611 = vunpack.c.l.b16 %v228
    %v612 = vunpack.c.h.b16 %v228
    %v613 = vunpack.c.l.b16 %v229
    %v614 = vunpack.c.h.b16 %v229
    %v615 = vunpack.c.l.b16 %v230
    %v616 = vunpack.c.h.b16 %v230
    %v617 = vunpack.c.l.b16 %v231
    %v618 = vunpack.c.h.b16 %v231
    %v619 = vunpack.c.l.b16 %v232
    %v620 = vunpack.c.h.b16 %v232
    %v621 = vunpack.c.l.b16 %v233
    %v622 = vunpack.c.h.b16 %v233
    %v623 = vunpack.c.l.b16 %v234
    %v624 = vunpack.c.h.b16 %v234
    %v625 = vunpack.c.l.b16 %v235
    %v626 = vunpack.c.h.b16 %v235
    %v627 = vunpack.c.l.b16 %v236
    %v628 = vunpack.c.h.b16 %v236
    %v629 = vunpack.c.l.b16 %v237
    %v630 = vunpack.c.h.b16 %v237
    %v631 = vunpack.c.l.b16 %v238
    %v632 = vunpack.c.h.b16 %v238
    %v633 = vunpack.c.l.b16 %v239
    %v634 = vunpack.c.h.b16 %v239
    %v635 = vunpack.c.l.b16 %v240
    %v636 = vunpack.c.h.b16 %v240
    %v637 = vunpack.c.l.b16 %v241
    %v638 = vunpack.c.h.b16 %v241
    %v639 = vunpack.c.l.b16 %v242
    %v640 = vunpack.c.h.b16 %v242
    %v641 = vunpack.c.l.b16 %v243
    %v642 = vunpack.c.h.b16 %v243
    %v643 = vunpack.c.l.b16 %v244
    %v644 = vunpack.c.h.b16 %v244
    %v645 = vunpack.c.l.b16 %v245
    %v646 = vunpack.c.h.b16 %v245
    %v647 = vunpack.c.l.b16 %v246
    %v648 = vunpack.c.h.b16 %v246
    %v649 = vunpack.c.l.b16 %v247
    %v650 = vunpack.c.h.b16 %v247
    %v651 = vunpack.c.l.b16 %v248
    %v652 = vunpack.c.h.b16 %v248
    %v653 = vpack.c.b16 %v405, %v397
    %v654 = vpack.c.b16 %v406, %v398
    %v655 = vpack.c.b16 %v407, %v399
    %v656 = vpack.c.b16 %v408, %v400
    %v657 = vpack.c.b16 %v409, %v401
    %v658 = vpack.c.b16 %v410, %v402
    %v659 = vpack.c.b16 %v411, %v403
    %v660 = vpack.c.b16 %v412, %v404
    %v661 = vpack.c.b16 %v421, %v413
    %v662 = vpack.c.b16 %v422, %v414
    %v663 = vpack.c.b16 %v423, %v415
    %v664 = vpack.c.b16 %v424, %v416
    %v665 = vpack.c.b16 %v425, %v417
    %v666 = vpack.c.b16 %v426, %v418
    %v667 = vpack.c.b16 %v427, %v419
    %v668 = vpack.c.b16 %v428, %v420
    %v669 = vpack.c.b16 %v437, %v429
    %v670 = vpack.c.b16 %v438, %v430
    %v671 = vpack.c.b16 %v439, %v431
    %v672 = vpack.c.b16 %v440, %v432
    %v673 = vpack.c.b16 %v441, %v433
    %v674 = vpack.c.b16 %v442, %v434
    %v675 = vpack.c.b16 %v443, %v435
    %v676 = vpack.c.b16 %v444, %v436
    %v677 = vpack.c.b16 %v453, %v445
    %v678 = vpack.c.b16 %v454, %v446
    %v679 = vpack.c.b16 %v455, %v447
    %v680 = vpack.c.b16 %v456, %v448
    %v681 = vpack.c.b16 %v457, %v449
    %v682 = vpack.c.b16 %v458, %v450
    %v683 = vpack.c.b16 %v459, %v451
    %v684 = vpack.c.b16 %v460, %v452
    %v685 = vpack.c.b16 %v469, %v461
    %v686 = vpack.c.b16 %v470, %v462
    %v687 = vpack.c.b16 %v471, %v463
    %v688 = vpack.c.b16 %v472, %v464
    %v689 = vpack.c.b16 %v473, %v465
    %v690 = vpack.c.b16 %v474, %v466
    %v691 = vpack.c.b16 %v475, %v467
    %v692 = vpack.c.b16 %v476, %v468
    %v693 = vpack.c.b16 %v485, %v477
    %v694 = vpack.c.b16 %v486, %v478
    %v695 = vpack.c.b16 %v487, %v479
    %v696 = vpack.c.b16 %v488, %v480
    %v697 = vpack.c.b16 %v489, %v481
    %v698 = vpack.c.b16 %v490, %v482
    %v699 = vpack.c.b16 %v491, %v483
    %v700 = vpack.c.b16 %v492, %v484
    %v701 = vpack.c.b16 %v501, %v493
    %v702 = vpack.c.b16 %v502, %v494
    %v703 = vpack.c.b16 %v503, %v495
    %v704 = vpack.c.b16 %v504, %v496
    %v705 = vpack.c.b16 %v505, %v497
    %v706 = vpack.c.b16 %v506, %v498
    %v707 = vpack.c.b16 %v507, %v499
    %v708 = vpack.c.b16 %v508, %v500
    %v709 = vpack.c.b16 %v517, %v509
    %v710 = vpack.c.b16 %v518, %v510
    %v711 = vpack.c.b16 %v519, %v511
    %v712 = vpack.c.b16 %v520, %v512
    %v713 = vpack.c.b16 %v521, %v513
    %v714 = vpack.c.b16 %v522, %v514
    %v715 = vpack.c.b16 %v523, %v515
    %v716 = vpack.c.b16 %v524, %v516
    %v717 = vpack.c.b16 %v533, %v525
    %v718 = vpack.c.b16 %v534, %v526
    %v719 = vpack.c.b16 %v535, %v527
    %v720 = vpack.c.b16 %v536, %v528
    %v721 = vpack.c.b16 %v537, %v529
    %v722 = vpack.c.b16 %v538, %v530
    %v723 = vpack.c.b16 %v539, %v531
    %v724 = vpack.c.b16 %v540, %v532
    %v725 = vpack.c.b16 %v549, %v541
    %v726 = vpack.c.b16 %v550, %v542
    %v727 = vpack.c.b16 %v551, %v543
    %v728 = vpack.c.b16 %v552, %v544
    %v729 = vpack.c.b16 %v553, %v545
    %v730 = vpack.c.b16 %v554, %v546
    %v731 = vpack.c.b16 %v555, %v547
    %v732 = vpack.c.b16 %v556, %v548
    %v733 = vpack.c.b16 %v565, %v557
    %v734 = vpack.c.b16 %v566, %v558
    %v735 = vpack.c.b16 %v567, %v559
    %v736 = vpack.c.b16 %v568, %v560
    %v737 = vpack.c.b16 %v569, %v561
    %v738 = vpack.c.b16 %v570, %v562
    %v739 = vpack.c.b16 %v571, %v563
    %v740 = vpack.c.b16 %v572, %v564
    %v741 = vpack.c.b16 %v581, %v573
    %v742 = vpack.c.b16 %v582, %v574
    %v743 = vpack.c.b16 %v583, %v575
    %v744 = vpack.c.b16 %v584, %v576
    %v745 = vpack.c.b16 %v585, %v577
    %v746 = vpack.c.b16 %v586, %v578
    %v747 = vpack.c.b16 %v587, %v579
    %v748 = vpack.c.b16 %v588, %v580
    %v749 = vpack.c.b16 %v597, %v589
    %v750 = vpack.c.b16 %v598, %v590
    %v751 = vpack.c.b16 %v599, %v591
    %v752 = vpack.c.b16 %v600, %v592
    %v753 = vpack.c.b16 %v601, %v593
    %v754 = vpack.c.b16 %v602, %v594
    %v755 = vpack.c.b16 %v603, %v595
    %v756 = vpack.c.b16 %v604, %v596
    %v757 = vpack.c.b16 %v613, %v605
    %v758 = vpack.c.b16 %v614, %v606
    %v759 = vpack.c.b16 %v615, %v607
    %v760 = vpack.c.b16 %v616, %v608
    %v761 = vpack.c.b16 %v617, %v609
    %v762 = vpack.c.b16 %v618, %v610
    %v763 = vpack.c.b16 %v619, %v611
    %v764 = vpack.c.b16 %v620, %v612
    %v765 = vpack.c.b16 %v629, %v621
    %v766 = vpack.c.b16 %v630, %v622
    %v767 = vpack.c.b16 %v631, %v623
    %v768 = vpack.c.b16 %v632, %v624
    %v769 = vpack.c.b16 %v633, %v625
    %v770 = vpack.c.b16 %v634, %v626
    %v771 = vpack.c.b16 %v635, %v627
    %v772 = vpack.c.b16 %v636, %v628
    %v773 = vpack.c.b16 %v645, %v637
    %v774 = vpack.c.b16 %v646, %v638
    %v775 = vpack.c.b16 %v647, %v639
    %v776 = vpack.c.b16 %v648, %v640
    %v777 = vpack.c.b16 %v649, %v641
    %v778 = vpack.c.b16 %v650, %v642
    %v779 = vpack.c.b16 %v651, %v643
    %v780 = vpack.c.b16 %v652, %v644
    %909 = vmatprep.subr.bf16.mxu0 %v654
    %910 = vmatpush1.bf16.msra.mxu0 %v653
    %911 = vmatprep.subr.bf16.mxu0 %v662
    %912 = vmatpush1.bf16.msra.mxu0 %v661
    %913 = vmatprep.subr.bf16.mxu0 %v670
    %914 = vmatpush1.bf16.msra.mxu0 %v669
    %915 = vmatprep.subr.bf16.mxu0 %v678
    %916 = vmatpush1.bf16.msra.mxu0 %v677
    %917 = vmatprep.subr.bf16.mxu0 %v686
    %918 = vmatpush1.bf16.msra.mxu0 %v685
    %919 = vmatprep.subr.bf16.mxu0 %v694
    %920 = vmatpush1.bf16.msra.mxu0 %v693
    %921 = vmatprep.subr.bf16.mxu0 %v702
    %922 = vmatpush1.bf16.msra.mxu0 %v701
    %923 = vmatprep.subr.bf16.mxu0 %v710
    %924 = vmatpush1.bf16.msra.mxu0 %v709
    %925 = vmatprep.subr.bf16.mxu0 %v718
    %926 = vmatpush1.bf16.msra.mxu0 %v717
    %927 = vmatprep.subr.bf16.mxu0 %v726
    %928 = vmatpush1.bf16.msra.mxu0 %v725
    %929 = vmatprep.subr.bf16.mxu0 %v734
    %930 = vmatpush1.bf16.msra.mxu0 %v733
    %931 = vmatprep.subr.bf16.mxu0 %v742
    %932 = vmatpush1.bf16.msra.mxu0 %v741
    %933 = vmatprep.subr.bf16.mxu0 %v750
    %934 = vmatpush1.bf16.msra.mxu0 %v749
    %935 = vmatprep.subr.bf16.mxu0 %v758
    %936 = vmatpush1.bf16.msra.mxu0 %v757
    %937 = vmatprep.subr.bf16.mxu0 %v766
    %938 = vmatpush1.bf16.msra.mxu0 %v765
    %939 = vmatprep.subr.bf16.mxu0 %v774
    %940 = vmatpush1.bf16.msra.mxu0 %v773
    %941 = vmatprep.mubr.bf16.mxu0 %v262
    %942 = vmatmul.mubr.bf16.gmra.mrb[0].mxu0 %v261
    %v943 = vpop.f32.mrb[0].mxu0
    %v944 = vadd.f32 0.0, %v943
    %v945 = vpop.f32.mrb[0].mxu0
    %v946 = vadd.f32 0.0, %v945
    %v947 = vpop.f32.mrb[0].mxu0
    %v948 = vadd.f32 0.0, %v947
    %v949 = vpop.f32.mrb[0].mxu0
    %v950 = vadd.f32 0.0, %v949
    %951 = vmatprep.mubr.bf16.mxu0 %v264
    %952 = vmatmul.mubr.bf16.gmra.mrb[0].mxu0 %v263
    %v953 = vpop.f32.mrb[0].mxu0
    %v954 = vadd.f32 0.0, %v953
    %v955 = vpop.f32.mrb[0].mxu0
    %v956 = vadd.f32 0.0, %v955
    %v957 = vpop.f32.mrb[0].mxu0
    %v958 = vadd.f32 0.0, %v957
    %v959 = vpop.f32.mrb[0].mxu0
    %v960 = vadd.f32 0.0, %v959
    %961 = vdwg.mxu0
    %962 = vmatprep.subr.bf16.mxu0 %v656
    %963 = vmatpush1.bf16.msra.mxu0 %v655
    %964 = vmatprep.subr.bf16.mxu0 %v664
    %965 = vmatpush1.bf16.msra.mxu0 %v663
    %966 = vmatprep.subr.bf16.mxu0 %v672
    %967 = vmatpush1.bf16.msra.mxu0 %v671
    %968 = vmatprep.subr.bf16.mxu0 %v680
    %969 = vmatpush1.bf16.msra.mxu0 %v679
    %970 = vmatprep.subr.bf16.mxu0 %v688
    %971 = vmatpush1.bf16.msra.mxu0 %v687
    %972 = vmatprep.subr.bf16.mxu0 %v696
    %973 = vmatpush1.bf16.msra.mxu0 %v695
    %974 = vmatprep.subr.bf16.mxu0 %v704
    %975 = vmatpush1.bf16.msra.mxu0 %v703
    %976 = vmatprep.subr.bf16.mxu0 %v712
    %977 = vmatpush1.bf16.msra.mxu0 %v711
    %978 = vmatprep.subr.bf16.mxu0 %v720
    %979 = vmatpush1.bf16.msra.mxu0 %v719
    %980 = vmatprep.subr.bf16.mxu0 %v728
    %981 = vmatpush1.bf16.msra.mxu0 %v727
    %982 = vmatprep.subr.bf16.mxu0 %v736
    %983 = vmatpush1.bf16.msra.mxu0 %v735
    %984 = vmatprep.subr.bf16.mxu0 %v744
    %985 = vmatpush1.bf16.msra.mxu0 %v743
    %986 = vmatprep.subr.bf16.mxu0 %v752
    %987 = vmatpush1.bf16.msra.mxu0 %v751
    %988 = vmatprep.subr.bf16.mxu0 %v760
    %989 = vmatpush1.bf16.msra.mxu0 %v759
    %990 = vmatprep.subr.bf16.mxu0 %v768
    %991 = vmatpush1.bf16.msra.mxu0 %v767
    %992 = vmatprep.subr.bf16.mxu0 %v776
    %993 = vmatpush1.bf16.msra.mxu0 %v775
    %994 = vmatprep.mubr.bf16.mxu0 %v262
    %995 = vmatmul.mubr.bf16.gmra.mrb[0].mxu0 %v261
    %v996 = vpop.f32.mrb[0].mxu0
    %v997 = vadd.f32 0.0, %v996
    %v998 = vpop.f32.mrb[0].mxu0
    %v999 = vadd.f32 0.0, %v998
    %v1000 = vpop.f32.mrb[0].mxu0
    %v1001 = vadd.f32 0.0, %v1000
    %v1002 = vpop.f32.mrb[0].mxu0
    %v1003 = vadd.f32 0.0, %v1002
    %1004 = vmatprep.mubr.bf16.mxu0 %v264
    %1005 = vmatmul.mubr.bf16.gmra.mrb[0].mxu0 %v263
    %v1006 = vpop.f32.mrb[0].mxu0
    %v1007 = vadd.f32 0.0, %v1006
    %v1008 = vpop.f32.mrb[0].mxu0
    %v1009 = vadd.f32 0.0, %v1008
    %v1010 = vpop.f32.mrb[0].mxu0
    %v1011 = vadd.f32 0.0, %v1010
    %v1012 = vpop.f32.mrb[0].mxu0
    %v1013 = vadd.f32 0.0, %v1012
    %1014 = vdwg.mxu0
    %1015 = vmatprep.subr.bf16.mxu0 %v658
    %1016 = vmatpush1.bf16.msra.mxu0 %v657
    %1017 = vmatprep.subr.bf16.mxu0 %v666
    %1018 = vmatpush1.bf16.msra.mxu0 %v665
    %1019 = vmatprep.subr.bf16.mxu0 %v674
    %1020 = vmatpush1.bf16.msra.mxu0 %v673
    %1021 = vmatprep.subr.bf16.mxu0 %v682
    %1022 = vmatpush1.bf16.msra.mxu0 %v681
    %1023 = vmatprep.subr.bf16.mxu0 %v690
    %1024 = vmatpush1.bf16.msra.mxu0 %v689
    %1025 = vmatprep.subr.bf16.mxu0 %v698
    %1026 = vmatpush1.bf16.msra.mxu0 %v697
    %1027 = vmatprep.subr.bf16.mxu0 %v706
    %1028 = vmatpush1.bf16.msra.mxu0 %v705
    %1029 = vmatprep.subr.bf16.mxu0 %v714
    %1030 = vmatpush1.bf16.msra.mxu0 %v713
    %1031 = vmatprep.subr.bf16.mxu0 %v722
    %1032 = vmatpush1.bf16.msra.mxu0 %v721
    %1033 = vmatprep.subr.bf16.mxu0 %v730
    %1034 = vmatpush1.bf16.msra.mxu0 %v729
    %1035 = vmatprep.subr.bf16.mxu0 %v738
    %1036 = vmatpush1.bf16.msra.mxu0 %v737
    %1037 = vmatprep.subr.bf16.mxu0 %v746
    %1038 = vmatpush1.bf16.msra.mxu0 %v745
    %1039 = vmatprep.subr.bf16.mxu0 %v754
    %1040 = vmatpush1.bf16.msra.mxu0 %v753
    %1041 = vmatprep.subr.bf16.mxu0 %v762
    %1042 = vmatpush1.bf16.msra.mxu0 %v761
    %1043 = vmatprep.subr.bf16.mxu0 %v770
    %1044 = vmatpush1.bf16.msra.mxu0 %v769
    %1045 = vmatprep.subr.bf16.mxu0 %v778
    %1046 = vmatpush1.bf16.msra.mxu0 %v777
    %1047 = vmatprep.mubr.bf16.mxu0 %v262
    %1048 = vmatmul.mubr.bf16.gmra.mrb[0].mxu0 %v261
    %v1049 = vpop.f32.mrb[0].mxu0
    %v1050 = vadd.f32 0.0, %v1049
    %v1051 = vpop.f32.mrb[0].mxu0
    %v1052 = vadd.f32 0.0, %v1051
    %v1053 = vpop.f32.mrb[0].mxu0
    %v1054 = vadd.f32 0.0, %v1053
    %v1055 = vpop.f32.mrb[0].mxu0
    %v1056 = vadd.f32 0.0, %v1055
    %1057 = vmatprep.mubr.bf16.mxu0 %v264
    %1058 = vmatmul.mubr.bf16.gmra.mrb[0].mxu0 %v263
    %v1059 = vpop.f32.mrb[0].mxu0
    %v1060 = vadd.f32 0.0, %v1059
    %v1061 = vpop.f32.mrb[0].mxu0
    %v1062 = vadd.f32 0.0, %v1061
    %v1063 = vpop.f32.mrb[0].mxu0
    %v1064 = vadd.f32 0.0, %v1063
    %v1065 = vpop.f32.mrb[0].mxu0
    %v1066 = vadd.f32 0.0, %v1065
    %1067 = vdwg.mxu0
    %1068 = vmatprep.subr.bf16.mxu0 %v660
    %1069 = vmatpush1.bf16.msra.mxu0 %v659
    %1070 = vmatprep.subr.bf16.mxu0 %v668
    %1071 = vmatpush1.bf16.msra.mxu0 %v667
    %1072 = vmatprep.subr.bf16.mxu0 %v676
    %1073 = vmatpush1.bf16.msra.mxu0 %v675
    %1074 = vmatprep.subr.bf16.mxu0 %v684
    %1075 = vmatpush1.bf16.msra.mxu0 %v683
    %1076 = vmatprep.subr.bf16.mxu0 %v692
    %1077 = vmatpush1.bf16.msra.mxu0 %v691
    %1078 = vmatprep.subr.bf16.mxu0 %v700
    %1079 = vmatpush1.bf16.msra.mxu0 %v699
    %1080 = vmatprep.subr.bf16.mxu0 %v708
    %1081 = vmatpush1.bf16.msra.mxu0 %v707
    %1082 = vmatprep.subr.bf16.mxu0 %v716
    %1083 = vmatpush1.bf16.msra.mxu0 %v715
    %1084 = vmatprep.subr.bf16.mxu0 %v724
    %1085 = vmatpush1.bf16.msra.mxu0 %v723
    %1086 = vmatprep.subr.bf16.mxu0 %v732
    %1087 = vmatpush1.bf16.msra.mxu0 %v731
    %1088 = vmatprep.subr.bf16.mxu0 %v740
    %1089 = vmatpush1.bf16.msra.mxu0 %v739
    %1090 = vmatprep.subr.bf16.mxu0 %v748
    %1091 = vmatpush1.bf16.msra.mxu0 %v747
    %1092 = vmatprep.subr.bf16.mxu0 %v756
    %1093 = vmatpush1.bf16.msra.mxu0 %v755
    %1094 = vmatprep.subr.bf16.mxu0 %v764
    %1095 = vmatpush1.bf16.msra.mxu0 %v763
    %1096 = vmatprep.subr.bf16.mxu0 %v772
    %1097 = vmatpush1.bf16.msra.mxu0 %v771
    %1098 = vmatprep.subr.bf16.mxu0 %v780
    %1099 = vmatpush1.bf16.msra.mxu0 %v779
    %1100 = vmatprep.mubr.bf16.mxu0 %v262
    %1101 = vmatmul.mubr.bf16.gmra.mrb[0].mxu0 %v261
    %v1102 = vpop.f32.mrb[0].mxu0
    %v1103 = vadd.f32 0.0, %v1102
    %v1104 = vpop.f32.mrb[0].mxu0
    %v1105 = vadd.f32 0.0, %v1104
    %v1106 = vpop.f32.mrb[0].mxu0
    %v1107 = vadd.f32 0.0, %v1106
    %v1108 = vpop.f32.mrb[0].mxu0
    %v1109 = vadd.f32 0.0, %v1108
    %1110 = vmatprep.mubr.bf16.mxu0 %v264
    %1111 = vmatmul.mubr.bf16.gmra.mrb[0].mxu0 %v263
    %v1112 = vpop.f32.mrb[0].mxu0
    %v1113 = vadd.f32 0.0, %v1112
    %v1114 = vpop.f32.mrb[0].mxu0
    %v1115 = vadd.f32 0.0, %v1114
    %v1116 = vpop.f32.mrb[0].mxu0
    %v1117 = vadd.f32 0.0, %v1116
    %v1118 = vpop.f32.mrb[0].mxu0
    %v1119 = vadd.f32 0.0, %v1118
    %1120 = vdwg.mxu0
    %v1121 = vld [vmem:[#allocation7] sm:$0xff]
    %v1122 = vld [vmem:[#allocation7 + $0x8] sm:$0xff]
    %v1123 = vld [vmem:[#allocation7 + $0x10] sm:$0xff]
    %v1124 = vld [vmem:[#allocation7 + $0x18] sm:$0xff]
    %v1125 = vld [vmem:[#allocation7 + $0x20] sm:$0xff]
    %v1126 = vld [vmem:[#allocation7 + $0x28] sm:$0xff]
    %v1127 = vld [vmem:[#allocation7 + $0x30] sm:$0xff]
    %v1128 = vld [vmem:[#allocation7 + $0x38] sm:$0xff]
    %v1129 = vunpack.c.0.s8 %v1121
    %v1130 = vunpack.c.0.s8 %v1122
    %v1131 = vunpack.c.0.s8 %v1123
    %v1132 = vunpack.c.0.s8 %v1124
    %v1133 = vunpack.c.0.s8 %v1125
    %v1134 = vunpack.c.0.s8 %v1126
    %v1135 = vunpack.c.0.s8 %v1127
    %v1136 = vunpack.c.0.s8 %v1128
    %v1137 = vunpack.c.1.s8 %v1121
    %v1138 = vunpack.c.1.s8 %v1122
    %v1139 = vunpack.c.1.s8 %v1123
    %v1140 = vunpack.c.1.s8 %v1124
    %v1141 = vunpack.c.1.s8 %v1125
    %v1142 = vunpack.c.1.s8 %v1126
    %v1143 = vunpack.c.1.s8 %v1127
    %v1144 = vunpack.c.1.s8 %v1128
    %v1145 = vunpack.c.2.s8 %v1121
    %v1146 = vunpack.c.2.s8 %v1122
    %v1147 = vunpack.c.2.s8 %v1123
    %v1148 = vunpack.c.2.s8 %v1124
    %v1149 = vunpack.c.2.s8 %v1125
    %v1150 = vunpack.c.2.s8 %v1126
    %v1151 = vunpack.c.2.s8 %v1127
    %v1152 = vunpack.c.2.s8 %v1128
    %v1153 = vunpack.c.3.s8 %v1121
    %v1154 = vunpack.c.3.s8 %v1122
    %v1155 = vunpack.c.3.s8 %v1123
    %v1156 = vunpack.c.3.s8 %v1124
    %v1157 = vunpack.c.3.s8 %v1125
    %v1158 = vunpack.c.3.s8 %v1126
    %v1159 = vunpack.c.3.s8 %v1127
    %v1160 = vunpack.c.3.s8 %v1128
    %v1161 = vcvt.s32.f32 %v1129
    %v1162 = vcvt.s32.f32 %v1130
    %v1163 = vcvt.s32.f32 %v1131
    %v1164 = vcvt.s32.f32 %v1132
    %v1165 = vcvt.s32.f32 %v1133
    %v1166 = vcvt.s32.f32 %v1134
    %v1167 = vcvt.s32.f32 %v1135
    %v1168 = vcvt.s32.f32 %v1136
    %v1169 = vcvt.s32.f32 %v1137
    %v1170 = vcvt.s32.f32 %v1138
    %v1171 = vcvt.s32.f32 %v1139
    %v1172 = vcvt.s32.f32 %v1140
    %v1173 = vcvt.s32.f32 %v1141
    %v1174 = vcvt.s32.f32 %v1142
    %v1175 = vcvt.s32.f32 %v1143
    %v1176 = vcvt.s32.f32 %v1144
    %v1177 = vcvt.s32.f32 %v1145
    %v1178 = vcvt.s32.f32 %v1146
    %v1179 = vcvt.s32.f32 %v1147
    %v1180 = vcvt.s32.f32 %v1148
    %v1181 = vcvt.s32.f32 %v1149
    %v1182 = vcvt.s32.f32 %v1150
    %v1183 = vcvt.s32.f32 %v1151
    %v1184 = vcvt.s32.f32 %v1152
    %v1185 = vcvt.s32.f32 %v1153
    %v1186 = vcvt.s32.f32 %v1154
    %v1187 = vcvt.s32.f32 %v1155
    %v1188 = vcvt.s32.f32 %v1156
    %v1189 = vcvt.s32.f32 %v1157
    %v1190 = vcvt.s32.f32 %v1158
    %v1191 = vcvt.s32.f32 %v1159
    %v1192 = vcvt.s32.f32 %v1160
    %v1193 = vand.u32 2147483647, %v944
    %v1194 = vand.u32 2147483647, %v946
    %v1195 = vand.u32 2147483647, %v997
    %v1196 = vand.u32 2147483647, %v999
    %v1197 = vand.u32 2147483647, %v1050
    %v1198 = vand.u32 2147483647, %v1052
    %v1199 = vand.u32 2147483647, %v1103
    %v1200 = vand.u32 2147483647, %v1105
    %v1201 = vand.u32 2147483647, %v948
    %v1202 = vand.u32 2147483647, %v950
    %v1203 = vand.u32 2147483647, %v1001
    %v1204 = vand.u32 2147483647, %v1003
    %v1205 = vand.u32 2147483647, %v1054
    %v1206 = vand.u32 2147483647, %v1056
    %v1207 = vand.u32 2147483647, %v1107
    %v1208 = vand.u32 2147483647, %v1109
    %v1209 = vand.u32 2147483647, %v954
    %v1210 = vand.u32 2147483647, %v956
    %v1211 = vand.u32 2147483647, %v1007
    %v1212 = vand.u32 2147483647, %v1009
    %v1213 = vand.u32 2147483647, %v1060
    %v1214 = vand.u32 2147483647, %v1062
    %v1215 = vand.u32 2147483647, %v1113
    %v1216 = vand.u32 2147483647, %v1115
    %v1217 = vand.u32 2147483647, %v958
    %v1218 = vand.u32 2147483647, %v960
    %v1219 = vand.u32 2147483647, %v1011
    %v1220 = vand.u32 2147483647, %v1013
    %v1221 = vand.u32 2147483647, %v1064
    %v1222 = vand.u32 2147483647, %v1066
    %v1223 = vand.u32 2147483647, %v1117
    %v1224 = vand.u32 2147483647, %v1119
    %v1225 = vsub.f32 0.0, %v1193
    %v1226 = vsub.f32 0.0, %v1194
    %v1227 = vsub.f32 0.0, %v1195
    %v1228 = vsub.f32 0.0, %v1196
    %v1229 = vsub.f32 0.0, %v1197
    %v1230 = vsub.f32 0.0, %v1198
    %v1231 = vsub.f32 0.0, %v1199
    %v1232 = vsub.f32 0.0, %v1200
    %v1233 = vsub.f32 0.0, %v1201
    %v1234 = vsub.f32 0.0, %v1202
    %v1235 = vsub.f32 0.0, %v1203
    %v1236 = vsub.f32 0.0, %v1204
    %v1237 = vsub.f32 0.0, %v1205
    %v1238 = vsub.f32 0.0, %v1206
    %v1239 = vsub.f32 0.0, %v1207
    %v1240 = vsub.f32 0.0, %v1208
    %v1241 = vsub.f32 0.0, %v1209
    %v1242 = vsub.f32 0.0, %v1210
    %v1243 = vsub.f32 0.0, %v1211
    %v1244 = vsub.f32 0.0, %v1212
    %v1245 = vsub.f32 0.0, %v1213
    %v1246 = vsub.f32 0.0, %v1214
    %v1247 = vsub.f32 0.0, %v1215
    %v1248 = vsub.f32 0.0, %v1216
    %v1249 = vsub.f32 0.0, %v1217
    %v1250 = vsub.f32 0.0, %v1218
    %v1251 = vsub.f32 0.0, %v1219
    %v1252 = vsub.f32 0.0, %v1220
    %v1253 = vsub.f32 0.0, %v1221
    %v1254 = vsub.f32 0.0, %v1222
    %v1255 = vsub.f32 0.0, %v1223
    %v1256 = vsub.f32 0.0, %v1224
    %v1257 = vmul.f32 %v1225, 1.442695
    %v1258 = vpow.pop %v1257
    %v1259 = vmul.f32 %v1226, 1.442695
    %v1260 = vpow.pop %v1259
    %v1261 = vmul.f32 %v1227, 1.442695
    %v1262 = vpow.pop %v1261
    %v1263 = vmul.f32 %v1228, 1.442695
    %v1264 = vpow.pop %v1263
    %v1265 = vmul.f32 %v1229, 1.442695
    %v1266 = vpow.pop %v1265
    %v1267 = vmul.f32 %v1230, 1.442695
    %v1268 = vpow.pop %v1267
    %v1269 = vmul.f32 %v1231, 1.442695
    %v1270 = vpow.pop %v1269
    %v1271 = vmul.f32 %v1232, 1.442695
    %v1272 = vpow.pop %v1271
    %v1273 = vmul.f32 %v1233, 1.442695
    %v1274 = vpow.pop %v1273
    %v1275 = vmul.f32 %v1234, 1.442695
    %v1276 = vpow.pop %v1275
    %v1277 = vmul.f32 %v1235, 1.442695
    %v1278 = vpow.pop %v1277
    %v1279 = vmul.f32 %v1236, 1.442695
    %v1280 = vpow.pop %v1279
    %v1281 = vmul.f32 %v1237, 1.442695
    %v1282 = vpow.pop %v1281
    %v1283 = vmul.f32 %v1238, 1.442695
    %v1284 = vpow.pop %v1283
    %v1285 = vmul.f32 %v1239, 1.442695
    %v1286 = vpow.pop %v1285
    %v1287 = vmul.f32 %v1240, 1.442695
    %v1288 = vpow.pop %v1287
    %v1289 = vmul.f32 %v1241, 1.442695
    %v1290 = vpow.pop %v1289
    %v1291 = vmul.f32 %v1242, 1.442695
    %v1292 = vpow.pop %v1291
    %v1293 = vmul.f32 %v1243, 1.442695
    %v1294 = vpow.pop %v1293
    %v1295 = vmul.f32 %v1244, 1.442695
    %v1296 = vpow.pop %v1295
    %v1297 = vmul.f32 %v1245, 1.442695
    %v1298 = vpow.pop %v1297
    %v1299 = vmul.f32 %v1246, 1.442695
    %v1300 = vpow.pop %v1299
    %v1301 = vmul.f32 %v1247, 1.442695
    %v1302 = vpow.pop %v1301
    %v1303 = vmul.f32 %v1248, 1.442695
    %v1304 = vpow.pop %v1303
    %v1305 = vmul.f32 %v1249, 1.442695
    %v1306 = vpow.pop %v1305
    %v1307 = vmul.f32 %v1250, 1.442695
    %v1308 = vpow.pop %v1307
    %v1309 = vmul.f32 %v1251, 1.442695
    %v1310 = vpow.pop %v1309
    %v1311 = vmul.f32 %v1252, 1.442695
    %v1312 = vpow.pop %v1311
    %v1313 = vmul.f32 %v1253, 1.442695
    %v1314 = vpow.pop %v1313
    %v1315 = vmul.f32 %v1254, 1.442695
    %v1316 = vpow.pop %v1315
    %v1317 = vmul.f32 %v1255, 1.442695
    %v1318 = vpow.pop %v1317
    %v1319 = vmul.f32 %v1256, 1.442695
    %v1320 = vpow.pop %v1319
    %v1321 = vmax.f32 %v944, 0.0
    %v1322 = vmax.f32 %v946, 0.0
    %v1323 = vmax.f32 %v997, 0.0
    %v1324 = vmax.f32 %v999, 0.0
    %v1325 = vmax.f32 %v1050, 0.0
    %v1326 = vmax.f32 %v1052, 0.0
    %v1327 = vmax.f32 %v1103, 0.0
    %v1328 = vmax.f32 %v1105, 0.0
    %v1329 = vmax.f32 %v948, 0.0
    %v1330 = vmax.f32 %v950, 0.0
    %v1331 = vmax.f32 %v1001, 0.0
    %v1332 = vmax.f32 %v1003, 0.0
    %v1333 = vmax.f32 %v1054, 0.0
    %v1334 = vmax.f32 %v1056, 0.0
    %v1335 = vmax.f32 %v1107, 0.0
    %v1336 = vmax.f32 %v1109, 0.0
    %v1337 = vmax.f32 %v954, 0.0
    %v1338 = vmax.f32 %v956, 0.0
    %v1339 = vmax.f32 %v1007, 0.0
    %v1340 = vmax.f32 %v1009, 0.0
    %v1341 = vmax.f32 %v1060, 0.0
    %v1342 = vmax.f32 %v1062, 0.0
    %v1343 = vmax.f32 %v1113, 0.0
    %v1344 = vmax.f32 %v1115, 0.0
    %v1345 = vmax.f32 %v958, 0.0
    %v1346 = vmax.f32 %v960, 0.0
    %v1347 = vmax.f32 %v1011, 0.0
    %v1348 = vmax.f32 %v1013, 0.0
    %v1349 = vmax.f32 %v1064, 0.0
    %v1350 = vmax.f32 %v1066, 0.0
    %v1351 = vmax.f32 %v1117, 0.0
    %v1352 = vmax.f32 %v1119, 0.0
    %v1353 = vmul.f32 %v944, %v1161
    %v1354 = vmul.f32 %v946, %v1162
    %v1355 = vmul.f32 %v997, %v1163
    %v1356 = vmul.f32 %v999, %v1164
    %v1357 = vmul.f32 %v1050, %v1165
    %v1358 = vmul.f32 %v1052, %v1166
    %v1359 = vmul.f32 %v1103, %v1167
    %v1360 = vmul.f32 %v1105, %v1168
    %v1361 = vmul.f32 %v948, %v1169
    %v1362 = vmul.f32 %v950, %v1170
    %v1363 = vmul.f32 %v1001, %v1171
    %v1364 = vmul.f32 %v1003, %v1172
    %v1365 = vmul.f32 %v1054, %v1173
    %v1366 = vmul.f32 %v1056, %v1174
    %v1367 = vmul.f32 %v1107, %v1175
    %v1368 = vmul.f32 %v1109, %v1176
    %v1369 = vmul.f32 %v954, %v1177
    %v1370 = vmul.f32 %v956, %v1178
    %v1371 = vmul.f32 %v1007, %v1179
    %v1372 = vmul.f32 %v1009, %v1180
    %v1373 = vmul.f32 %v1060, %v1181
    %v1374 = vmul.f32 %v1062, %v1182
    %v1375 = vmul.f32 %v1113, %v1183
    %v1376 = vmul.f32 %v1115, %v1184
    %v1377 = vmul.f32 %v958, %v1185
    %v1378 = vmul.f32 %v960, %v1186
    %v1379 = vmul.f32 %v1011, %v1187
    %v1380 = vmul.f32 %v1013, %v1188
    %v1381 = vmul.f32 %v1064, %v1189
    %v1382 = vmul.f32 %v1066, %v1190
    %v1383 = vmul.f32 %v1117, %v1191
    %v1384 = vmul.f32 %v1119, %v1192
    %v1385 = vsub.f32 %v1321, %v1353
    %v1386 = vsub.f32 %v1322, %v1354
    %v1387 = vsub.f32 %v1323, %v1355
    %v1388 = vsub.f32 %v1324, %v1356
    %v1389 = vsub.f32 %v1325, %v1357
    %v1390 = vsub.f32 %v1326, %v1358
    %v1391 = vsub.f32 %v1327, %v1359
    %v1392 = vsub.f32 %v1328, %v1360
    %v1393 = vsub.f32 %v1329, %v1361
    %v1394 = vsub.f32 %v1330, %v1362
    %v1395 = vsub.f32 %v1331, %v1363
    %v1396 = vsub.f32 %v1332, %v1364
    %v1397 = vsub.f32 %v1333, %v1365
    %v1398 = vsub.f32 %v1334, %v1366
    %v1399 = vsub.f32 %v1335, %v1367
    %v1400 = vsub.f32 %v1336, %v1368
    %v1401 = vsub.f32 %v1337, %v1369
    %v1402 = vsub.f32 %v1338, %v1370
    %v1403 = vsub.f32 %v1339, %v1371
    %v1404 = vsub.f32 %v1340, %v1372
    %v1405 = vsub.f32 %v1341, %v1373
    %v1406 = vsub.f32 %v1342, %v1374
    %v1407 = vsub.f32 %v1343, %v1375
    %v1408 = vsub.f32 %v1344, %v1376
    %v1409 = vsub.f32 %v1345, %v1377
    %v1410 = vsub.f32 %v1346, %v1378
    %v1411 = vsub.f32 %v1347, %v1379
    %v1412 = vsub.f32 %v1348, %v1380
    %v1413 = vsub.f32 %v1349, %v1381
    %v1414 = vsub.f32 %v1350, %v1382
    %v1415 = vsub.f32 %v1351, %v1383
    %v1416 = vsub.f32 %v1352, %v1384
    %v1417 = vadd.f32 %v1258, 1.0
    %v1418 = vadd.f32 %v1260, 1.0
    %v1419 = vadd.f32 %v1262, 1.0
    %v1420 = vadd.f32 %v1264, 1.0
    %v1421 = vadd.f32 %v1266, 1.0
    %v1422 = vadd.f32 %v1268, 1.0
    %v1423 = vadd.f32 %v1270, 1.0
    %v1424 = vadd.f32 %v1272, 1.0
    %v1425 = vadd.f32 %v1274, 1.0
    %v1426 = vadd.f32 %v1276, 1.0
    %v1427 = vadd.f32 %v1278, 1.0
    %v1428 = vadd.f32 %v1280, 1.0
    %v1429 = vadd.f32 %v1282, 1.0
    %v1430 = vadd.f32 %v1284, 1.0
    %v1431 = vadd.f32 %v1286, 1.0
    %v1432 = vadd.f32 %v1288, 1.0
    %v1433 = vadd.f32 %v1290, 1.0
    %v1434 = vadd.f32 %v1292, 1.0
    %v1435 = vadd.f32 %v1294, 1.0
    %v1436 = vadd.f32 %v1296, 1.0
    %v1437 = vadd.f32 %v1298, 1.0
    %v1438 = vadd.f32 %v1300, 1.0
    %v1439 = vadd.f32 %v1302, 1.0
    %v1440 = vadd.f32 %v1304, 1.0
    %v1441 = vadd.f32 %v1306, 1.0
    %v1442 = vadd.f32 %v1308, 1.0
    %v1443 = vadd.f32 %v1310, 1.0
    %v1444 = vadd.f32 %v1312, 1.0
    %v1445 = vadd.f32 %v1314, 1.0
    %v1446 = vadd.f32 %v1316, 1.0
    %v1447 = vadd.f32 %v1318, 1.0
    %v1448 = vadd.f32 %v1320, 1.0
    %v1449 = vlog2.pop %v1417
    %v1450 = vmul.f32 %v1449, 0.6931472
    %v1451 = vlog2.pop %v1418
    %v1452 = vmul.f32 %v1451, 0.6931472
    %v1453 = vlog2.pop %v1419
    %v1454 = vmul.f32 %v1453, 0.6931472
    %v1455 = vlog2.pop %v1420
    %v1456 = vmul.f32 %v1455, 0.6931472
    %v1457 = vlog2.pop %v1421
    %v1458 = vmul.f32 %v1457, 0.6931472
    %v1459 = vlog2.pop %v1422
    %v1460 = vmul.f32 %v1459, 0.6931472
    %v1461 = vlog2.pop %v1423
    %v1462 = vmul.f32 %v1461, 0.6931472
    %v1463 = vlog2.pop %v1424
    %v1464 = vmul.f32 %v1463, 0.6931472
    %v1465 = vlog2.pop %v1425
    %v1466 = vmul.f32 %v1465, 0.6931472
    %v1467 = vlog2.pop %v1426
    %v1468 = vmul.f32 %v1467, 0.6931472
    %v1469 = vlog2.pop %v1427
    %v1470 = vmul.f32 %v1469, 0.6931472
    %v1471 = vlog2.pop %v1428
    %v1472 = vmul.f32 %v1471, 0.6931472
    %v1473 = vlog2.pop %v1429
    %v1474 = vmul.f32 %v1473, 0.6931472
    %v1475 = vlog2.pop %v1430
    %v1476 = vmul.f32 %v1475, 0.6931472
    %v1477 = vlog2.pop %v1431
    %v1478 = vmul.f32 %v1477, 0.6931472
    %v1479 = vlog2.pop %v1432
    %v1480 = vmul.f32 %v1479, 0.6931472
    %v1481 = vlog2.pop %v1433
    %v1482 = vmul.f32 %v1481, 0.6931472
    %v1483 = vlog2.pop %v1434
    %v1484 = vmul.f32 %v1483, 0.6931472
    %v1485 = vlog2.pop %v1435
    %v1486 = vmul.f32 %v1485, 0.6931472
    %v1487 = vlog2.pop %v1436
    %v1488 = vmul.f32 %v1487, 0.6931472
    %v1489 = vlog2.pop %v1437
    %v1490 = vmul.f32 %v1489, 0.6931472
    %v1491 = vlog2.pop %v1438
    %v1492 = vmul.f32 %v1491, 0.6931472
    %v1493 = vlog2.pop %v1439
    %v1494 = vmul.f32 %v1493, 0.6931472
    %v1495 = vlog2.pop %v1440
    %v1496 = vmul.f32 %v1495, 0.6931472
    %v1497 = vlog2.pop %v1441
    %v1498 = vmul.f32 %v1497, 0.6931472
    %v1499 = vlog2.pop %v1442
    %v1500 = vmul.f32 %v1499, 0.6931472
    %v1501 = vlog2.pop %v1443
    %v1502 = vmul.f32 %v1501, 0.6931472
    %v1503 = vlog2.pop %v1444
    %v1504 = vmul.f32 %v1503, 0.6931472
    %v1505 = vlog2.pop %v1445
    %v1506 = vmul.f32 %v1505, 0.6931472
    %v1507 = vlog2.pop %v1446
    %v1508 = vmul.f32 %v1507, 0.6931472
    %v1509 = vlog2.pop %v1447
    %v1510 = vmul.f32 %v1509, 0.6931472
    %v1511 = vlog2.pop %v1448
    %v1512 = vmul.f32 %v1511, 0.6931472
    %v1513 = vadd.f32 %v1385, %v1450
    %v1514 = vadd.f32 %v1386, %v1452
    %v1515 = vadd.f32 %v1387, %v1454
    %v1516 = vadd.f32 %v1388, %v1456
    %v1517 = vadd.f32 %v1389, %v1458
    %v1518 = vadd.f32 %v1390, %v1460
    %v1519 = vadd.f32 %v1391, %v1462
    %v1520 = vadd.f32 %v1392, %v1464
    %v1521 = vadd.f32 %v1393, %v1466
    %v1522 = vadd.f32 %v1394, %v1468
    %v1523 = vadd.f32 %v1395, %v1470
    %v1524 = vadd.f32 %v1396, %v1472
    %v1525 = vadd.f32 %v1397, %v1474
    %v1526 = vadd.f32 %v1398, %v1476
    %v1527 = vadd.f32 %v1399, %v1478
    %v1528 = vadd.f32 %v1400, %v1480
    %v1529 = vadd.f32 %v1401, %v1482
    %v1530 = vadd.f32 %v1402, %v1484
    %v1531 = vadd.f32 %v1403, %v1486
    %v1532 = vadd.f32 %v1404, %v1488
    %v1533 = vadd.f32 %v1405, %v1490
    %v1534 = vadd.f32 %v1406, %v1492
    %v1535 = vadd.f32 %v1407, %v1494
    %v1536 = vadd.f32 %v1408, %v1496
    %v1537 = vadd.f32 %v1409, %v1498
    %v1538 = vadd.f32 %v1410, %v1500
    %v1539 = vadd.f32 %v1411, %v1502
    %v1540 = vadd.f32 %v1412, %v1504
    %v1541 = vadd.f32 %v1413, %v1506
    %v1542 = vadd.f32 %v1414, %v1508
    %v1543 = vadd.f32 %v1415, %v1510
    %v1544 = vadd.f32 %v1416, %v1512
    %v1545 = vrcp.pop %v1417
    %v1546 = vrcp.pop %v1418
    %v1547 = vrcp.pop %v1419
    %v1548 = vrcp.pop %v1420
    %v1549 = vrcp.pop %v1421
    %v1550 = vrcp.pop %v1422
    %v1551 = vrcp.pop %v1423
    %v1552 = vrcp.pop %v1424
    %v1553 = vrcp.pop %v1425
    %v1554 = vrcp.pop %v1426
    %v1555 = vrcp.pop %v1427
    %v1556 = vrcp.pop %v1428
    %v1557 = vrcp.pop %v1429
    %v1558 = vrcp.pop %v1430
    %v1559 = vrcp.pop %v1431
    %v1560 = vrcp.pop %v1432
    %v1561 = vrcp.pop %v1433
    %v1562 = vrcp.pop %v1434
    %v1563 = vrcp.pop %v1435
    %v1564 = vrcp.pop %v1436
    %v1565 = vrcp.pop %v1437
    %v1566 = vrcp.pop %v1438
    %v1567 = vrcp.pop %v1439
    %v1568 = vrcp.pop %v1440
    %v1569 = vrcp.pop %v1441
    %v1570 = vrcp.pop %v1442
    %v1571 = vrcp.pop %v1443
    %v1572 = vrcp.pop %v1444
    %v1573 = vrcp.pop %v1445
    %v1574 = vrcp.pop %v1446
    %v1575 = vrcp.pop %v1447
    %v1576 = vrcp.pop %v1448
    %vm1577 = vcmp.ge.f32.partialorder %v944, 0.0
    %vm1578 = vcmp.ge.f32.partialorder %v946, 0.0
    %vm1579 = vcmp.ge.f32.partialorder %v997, 0.0
    %vm1580 = vcmp.ge.f32.partialorder %v999, 0.0
    %vm1581 = vcmp.ge.f32.partialorder %v1050, 0.0
    %vm1582 = vcmp.ge.f32.partialorder %v1052, 0.0
    %vm1583 = vcmp.ge.f32.partialorder %v1103, 0.0
    %vm1584 = vcmp.ge.f32.partialorder %v1105, 0.0
    %vm1585 = vcmp.ge.f32.partialorder %v948, 0.0
    %vm1586 = vcmp.ge.f32.partialorder %v950, 0.0
    %vm1587 = vcmp.ge.f32.partialorder %v1001, 0.0
    %vm1588 = vcmp.ge.f32.partialorder %v1003, 0.0
    %vm1589 = vcmp.ge.f32.partialorder %v1054, 0.0
    %vm1590 = vcmp.ge.f32.partialorder %v1056, 0.0
    %vm1591 = vcmp.ge.f32.partialorder %v1107, 0.0
    %vm1592 = vcmp.ge.f32.partialorder %v1109, 0.0
    %vm1593 = vcmp.ge.f32.partialorder %v954, 0.0
    %vm1594 = vcmp.ge.f32.partialorder %v956, 0.0
    %vm1595 = vcmp.ge.f32.partialorder %v1007, 0.0
    %vm1596 = vcmp.ge.f32.partialorder %v1009, 0.0
    %vm1597 = vcmp.ge.f32.partialorder %v1060, 0.0
    %vm1598 = vcmp.ge.f32.partialorder %v1062, 0.0
    %vm1599 = vcmp.ge.f32.partialorder %v1113, 0.0
    %vm1600 = vcmp.ge.f32.partialorder %v1115, 0.0
    %vm1601 = vcmp.ge.f32.partialorder %v958, 0.0
    %vm1602 = vcmp.ge.f32.partialorder %v960, 0.0
    %vm1603 = vcmp.ge.f32.partialorder %v1011, 0.0
    %vm1604 = vcmp.ge.f32.partialorder %v1013, 0.0
    %vm1605 = vcmp.ge.f32.partialorder %v1064, 0.0
    %vm1606 = vcmp.ge.f32.partialorder %v1066, 0.0
    %vm1607 = vcmp.ge.f32.partialorder %v1117, 0.0
    %vm1608 = vcmp.ge.f32.partialorder %v1119, 0.0
    %v1609 = vmul.f32 %v1258, %v1545
    %v1610 = vmul.f32 %v1260, %v1546
    %v1611 = vmul.f32 %v1262, %v1547
    %v1612 = vmul.f32 %v1264, %v1548
    %v1613 = vmul.f32 %v1266, %v1549
    %v1614 = vmul.f32 %v1268, %v1550
    %v1615 = vmul.f32 %v1270, %v1551
    %v1616 = vmul.f32 %v1272, %v1552
    %v1617 = vmul.f32 %v1274, %v1553
    %v1618 = vmul.f32 %v1276, %v1554
    %v1619 = vmul.f32 %v1278, %v1555
    %v1620 = vmul.f32 %v1280, %v1556
    %v1621 = vmul.f32 %v1282, %v1557
    %v1622 = vmul.f32 %v1284, %v1558
    %v1623 = vmul.f32 %v1286, %v1559
    %v1624 = vmul.f32 %v1288, %v1560
    %v1625 = vmul.f32 %v1290, %v1561
    %v1626 = vmul.f32 %v1292, %v1562
    %v1627 = vmul.f32 %v1294, %v1563
    %v1628 = vmul.f32 %v1296, %v1564
    %v1629 = vmul.f32 %v1298, %v1565
    %v1630 = vmul.f32 %v1300, %v1566
    %v1631 = vmul.f32 %v1302, %v1567
    %v1632 = vmul.f32 %v1304, %v1568
    %v1633 = vmul.f32 %v1306, %v1569
    %v1634 = vmul.f32 %v1308, %v1570
    %v1635 = vmul.f32 %v1310, %v1571
    %v1636 = vmul.f32 %v1312, %v1572
    %v1637 = vmul.f32 %v1314, %v1573
    %v1638 = vmul.f32 %v1316, %v1574
    %v1639 = vmul.f32 %v1318, %v1575
    %v1640 = vmul.f32 %v1320, %v1576
    %v1641 = vsel %vm1577, %v1545, %v1609
    %v1642 = vsel %vm1578, %v1546, %v1610
    %v1643 = vsel %vm1579, %v1547, %v1611
    %v1644 = vsel %vm1580, %v1548, %v1612
    %v1645 = vsel %vm1581, %v1549, %v1613
    %v1646 = vsel %vm1582, %v1550, %v1614
    %v1647 = vsel %vm1583, %v1551, %v1615
    %v1648 = vsel %vm1584, %v1552, %v1616
    %v1649 = vsel %vm1585, %v1553, %v1617
    %v1650 = vsel %vm1586, %v1554, %v1618
    %v1651 = vsel %vm1587, %v1555, %v1619
    %v1652 = vsel %vm1588, %v1556, %v1620
    %v1653 = vsel %vm1589, %v1557, %v1621
    %v1654 = vsel %vm1590, %v1558, %v1622
    %v1655 = vsel %vm1591, %v1559, %v1623
    %v1656 = vsel %vm1592, %v1560, %v1624
    %v1657 = vsel %vm1593, %v1561, %v1625
    %v1658 = vsel %vm1594, %v1562, %v1626
    %v1659 = vsel %vm1595, %v1563, %v1627
    %v1660 = vsel %vm1596, %v1564, %v1628
    %v1661 = vsel %vm1597, %v1565, %v1629
    %v1662 = vsel %vm1598, %v1566, %v1630
    %v1663 = vsel %vm1599, %v1567, %v1631
    %v1664 = vsel %vm1600, %v1568, %v1632
    %v1665 = vsel %vm1601, %v1569, %v1633
    %v1666 = vsel %vm1602, %v1570, %v1634
    %v1667 = vsel %vm1603, %v1571, %v1635
    %v1668 = vsel %vm1604, %v1572, %v1636
    %v1669 = vsel %vm1605, %v1573, %v1637
    %v1670 = vsel %vm1606, %v1574, %v1638
    %v1671 = vsel %vm1607, %v1575, %v1639
    %v1672 = vsel %vm1608, %v1576, %v1640
    %v1673 = vmul.f32 %v1641, %v1161
    %v1674 = vmul.f32 %v1642, %v1162
    %v1675 = vmul.f32 %v1643, %v1163
    %v1676 = vmul.f32 %v1644, %v1164
    %v1677 = vmul.f32 %v1645, %v1165
    %v1678 = vmul.f32 %v1646, %v1166
    %v1679 = vmul.f32 %v1647, %v1167
    %v1680 = vmul.f32 %v1648, %v1168
    %v1681 = vmul.f32 %v1649, %v1169
    %v1682 = vmul.f32 %v1650, %v1170
    %v1683 = vmul.f32 %v1651, %v1171
    %v1684 = vmul.f32 %v1652, %v1172
    %v1685 = vmul.f32 %v1653, %v1173
    %v1686 = vmul.f32 %v1654, %v1174
    %v1687 = vmul.f32 %v1655, %v1175
    %v1688 = vmul.f32 %v1656, %v1176
    %v1689 = vmul.f32 %v1657, %v1177
    %v1690 = vmul.f32 %v1658, %v1178
    %v1691 = vmul.f32 %v1659, %v1179
    %v1692 = vmul.f32 %v1660, %v1180
    %v1693 = vmul.f32 %v1661, %v1181
    %v1694 = vmul.f32 %v1662, %v1182
    %v1695 = vmul.f32 %v1663, %v1183
    %v1696 = vmul.f32 %v1664, %v1184
    %v1697 = vmul.f32 %v1665, %v1185
    %v1698 = vmul.f32 %v1666, %v1186
    %v1699 = vmul.f32 %v1667, %v1187
    %v1700 = vmul.f32 %v1668, %v1188
    %v1701 = vmul.f32 %v1669, %v1189
    %v1702 = vmul.f32 %v1670, %v1190
    %v1703 = vmul.f32 %v1671, %v1191
    %v1704 = vmul.f32 %v1672, %v1192
    %v1705 = vsub.f32 1.0, %v1641
    %v1706 = vsub.f32 1.0, %v1642
    %v1707 = vsub.f32 1.0, %v1643
    %v1708 = vsub.f32 1.0, %v1644
    %v1709 = vsub.f32 1.0, %v1645
    %v1710 = vsub.f32 1.0, %v1646
    %v1711 = vsub.f32 1.0, %v1647
    %v1712 = vsub.f32 1.0, %v1648
    %v1713 = vsub.f32 1.0, %v1649
    %v1714 = vsub.f32 1.0, %v1650
    %v1715 = vsub.f32 1.0, %v1651
    %v1716 = vsub.f32 1.0, %v1652
    %v1717 = vsub.f32 1.0, %v1653
    %v1718 = vsub.f32 1.0, %v1654
    %v1719 = vsub.f32 1.0, %v1655
    %v1720 = vsub.f32 1.0, %v1656
    %v1721 = vsub.f32 1.0, %v1657
    %v1722 = vsub.f32 1.0, %v1658
    %v1723 = vsub.f32 1.0, %v1659
    %v1724 = vsub.f32 1.0, %v1660
    %v1725 = vsub.f32 1.0, %v1661
    %v1726 = vsub.f32 1.0, %v1662
    %v1727 = vsub.f32 1.0, %v1663
    %v1728 = vsub.f32 1.0, %v1664
    %v1729 = vsub.f32 1.0, %v1665
    %v1730 = vsub.f32 1.0, %v1666
    %v1731 = vsub.f32 1.0, %v1667
    %v1732 = vsub.f32 1.0, %v1668
    %v1733 = vsub.f32 1.0, %v1669
    %v1734 = vsub.f32 1.0, %v1670
    %v1735 = vsub.f32 1.0, %v1671
    %v1736 = vsub.f32 1.0, %v1672
    %v1737 = vsub.f32 1.0, %v1161
    %v1738 = vsub.f32 1.0, %v1162
    %v1739 = vsub.f32 1.0, %v1163
    %v1740 = vsub.f32 1.0, %v1164
    %v1741 = vsub.f32 1.0, %v1165
    %v1742 = vsub.f32 1.0, %v1166
    %v1743 = vsub.f32 1.0, %v1167
    %v1744 = vsub.f32 1.0, %v1168
    %v1745 = vsub.f32 1.0, %v1169
    %v1746 = vsub.f32 1.0, %v1170
    %v1747 = vsub.f32 1.0, %v1171
    %v1748 = vsub.f32 1.0, %v1172
    %v1749 = vsub.f32 1.0, %v1173
    %v1750 = vsub.f32 1.0, %v1174
    %v1751 = vsub.f32 1.0, %v1175
    %v1752 = vsub.f32 1.0, %v1176
    %v1753 = vsub.f32 1.0, %v1177
    %v1754 = vsub.f32 1.0, %v1178
    %v1755 = vsub.f32 1.0, %v1179
    %v1756 = vsub.f32 1.0, %v1180
    %v1757 = vsub.f32 1.0, %v1181
    %v1758 = vsub.f32 1.0, %v1182
    %v1759 = vsub.f32 1.0, %v1183
    %v1760 = vsub.f32 1.0, %v1184
    %v1761 = vsub.f32 1.0, %v1185
    %v1762 = vsub.f32 1.0, %v1186
    %v1763 = vsub.f32 1.0, %v1187
    %v1764 = vsub.f32 1.0, %v1188
    %v1765 = vsub.f32 1.0, %v1189
    %v1766 = vsub.f32 1.0, %v1190
    %v1767 = vsub.f32 1.0, %v1191
    %v1768 = vsub.f32 1.0, %v1192
    %v1769 = vmul.f32 %v1705, %v1737
    %v1770 = vmul.f32 %v1706, %v1738
    %v1771 = vmul.f32 %v1707, %v1739
    %v1772 = vmul.f32 %v1708, %v1740
    %v1773 = vmul.f32 %v1709, %v1741
    %v1774 = vmul.f32 %v1710, %v1742
    %v1775 = vmul.f32 %v1711, %v1743
    %v1776 = vmul.f32 %v1712, %v1744
    %v1777 = vmul.f32 %v1713, %v1745
    %v1778 = vmul.f32 %v1714, %v1746
    %v1779 = vmul.f32 %v1715, %v1747
    %v1780 = vmul.f32 %v1716, %v1748
    %v1781 = vmul.f32 %v1717, %v1749
    %v1782 = vmul.f32 %v1718, %v1750
    %v1783 = vmul.f32 %v1719, %v1751
    %v1784 = vmul.f32 %v1720, %v1752
    %v1785 = vmul.f32 %v1721, %v1753
    %v1786 = vmul.f32 %v1722, %v1754
    %v1787 = vmul.f32 %v1723, %v1755
    %v1788 = vmul.f32 %v1724, %v1756
    %v1789 = vmul.f32 %v1725, %v1757
    %v1790 = vmul.f32 %v1726, %v1758
    %v1791 = vmul.f32 %v1727, %v1759
    %v1792 = vmul.f32 %v1728, %v1760
    %v1793 = vmul.f32 %v1729, %v1761
    %v1794 = vmul.f32 %v1730, %v1762
    %v1795 = vmul.f32 %v1731, %v1763
    %v1796 = vmul.f32 %v1732, %v1764
    %v1797 = vmul.f32 %v1733, %v1765
    %v1798 = vmul.f32 %v1734, %v1766
    %v1799 = vmul.f32 %v1735, %v1767
    %v1800 = vmul.f32 %v1736, %v1768
    %v1801 = vadd.f32 %v1673, %v1769
    %v1802 = vadd.f32 %v1674, %v1770
    %v1803 = vadd.f32 %v1675, %v1771
    %v1804 = vadd.f32 %v1676, %v1772
    %v1805 = vadd.f32 %v1677, %v1773
    %v1806 = vadd.f32 %v1678, %v1774
    %v1807 = vadd.f32 %v1679, %v1775
    %v1808 = vadd.f32 %v1680, %v1776
    %v1809 = vadd.f32 %v1681, %v1777
    %v1810 = vadd.f32 %v1682, %v1778
    %v1811 = vadd.f32 %v1683, %v1779
    %v1812 = vadd.f32 %v1684, %v1780
    %v1813 = vadd.f32 %v1685, %v1781
    %v1814 = vadd.f32 %v1686, %v1782
    %v1815 = vadd.f32 %v1687, %v1783
    %v1816 = vadd.f32 %v1688, %v1784
    %v1817 = vadd.f32 %v1689, %v1785
    %v1818 = vadd.f32 %v1690, %v1786
    %v1819 = vadd.f32 %v1691, %v1787
    %v1820 = vadd.f32 %v1692, %v1788
    %v1821 = vadd.f32 %v1693, %v1789
    %v1822 = vadd.f32 %v1694, %v1790
    %v1823 = vadd.f32 %v1695, %v1791
    %v1824 = vadd.f32 %v1696, %v1792
    %v1825 = vadd.f32 %v1697, %v1793
    %v1826 = vadd.f32 %v1698, %v1794
    %v1827 = vadd.f32 %v1699, %v1795
    %v1828 = vadd.f32 %v1700, %v1796
    %v1829 = vadd.f32 %v1701, %v1797
    %v1830 = vadd.f32 %v1702, %v1798
    %v1831 = vadd.f32 %v1703, %v1799
    %v1832 = vadd.f32 %v1704, %v1800
    %v1833 = vsub.f32 1.0, %v1801
    %v1834 = vsub.f32 1.0, %v1802
    %v1835 = vsub.f32 1.0, %v1803
    %v1836 = vsub.f32 1.0, %v1804
    %v1837 = vsub.f32 1.0, %v1805
    %v1838 = vsub.f32 1.0, %v1806
    %v1839 = vsub.f32 1.0, %v1807
    %v1840 = vsub.f32 1.0, %v1808
    %v1841 = vsub.f32 1.0, %v1809
    %v1842 = vsub.f32 1.0, %v1810
    %v1843 = vsub.f32 1.0, %v1811
    %v1844 = vsub.f32 1.0, %v1812
    %v1845 = vsub.f32 1.0, %v1813
    %v1846 = vsub.f32 1.0, %v1814
    %v1847 = vsub.f32 1.0, %v1815
    %v1848 = vsub.f32 1.0, %v1816
    %v1849 = vsub.f32 1.0, %v1817
    %v1850 = vsub.f32 1.0, %v1818
    %v1851 = vsub.f32 1.0, %v1819
    %v1852 = vsub.f32 1.0, %v1820
    %v1853 = vsub.f32 1.0, %v1821
    %v1854 = vsub.f32 1.0, %v1822
    %v1855 = vsub.f32 1.0, %v1823
    %v1856 = vsub.f32 1.0, %v1824
    %v1857 = vsub.f32 1.0, %v1825
    %v1858 = vsub.f32 1.0, %v1826
    %v1859 = vsub.f32 1.0, %v1827
    %v1860 = vsub.f32 1.0, %v1828
    %v1861 = vsub.f32 1.0, %v1829
    %v1862 = vsub.f32 1.0, %v1830
    %v1863 = vsub.f32 1.0, %v1831
    %v1864 = vsub.f32 1.0, %v1832
    %v1865 = vmul.f32 %v1161, 0.25
    %v1866 = vmul.f32 %v1162, 0.25
    %v1867 = vmul.f32 %v1163, 0.25
    %v1868 = vmul.f32 %v1164, 0.25
    %v1869 = vmul.f32 %v1165, 0.25
    %v1870 = vmul.f32 %v1166, 0.25
    %v1871 = vmul.f32 %v1167, 0.25
    %v1872 = vmul.f32 %v1168, 0.25
    %v1873 = vmul.f32 %v1169, 0.25
    %v1874 = vmul.f32 %v1170, 0.25
    %v1875 = vmul.f32 %v1171, 0.25
    %v1876 = vmul.f32 %v1172, 0.25
    %v1877 = vmul.f32 %v1173, 0.25
    %v1878 = vmul.f32 %v1174, 0.25
    %v1879 = vmul.f32 %v1175, 0.25
    %v1880 = vmul.f32 %v1176, 0.25
    %v1881 = vmul.f32 %v1177, 0.25
    %v1882 = vmul.f32 %v1178, 0.25
    %v1883 = vmul.f32 %v1179, 0.25
    %v1884 = vmul.f32 %v1180, 0.25
    %v1885 = vmul.f32 %v1181, 0.25
    %v1886 = vmul.f32 %v1182, 0.25
    %v1887 = vmul.f32 %v1183, 0.25
    %v1888 = vmul.f32 %v1184, 0.25
    %v1889 = vmul.f32 %v1185, 0.25
    %v1890 = vmul.f32 %v1186, 0.25
    %v1891 = vmul.f32 %v1187, 0.25
    %v1892 = vmul.f32 %v1188, 0.25
    %v1893 = vmul.f32 %v1189, 0.25
    %v1894 = vmul.f32 %v1190, 0.25
    %v1895 = vmul.f32 %v1191, 0.25
    %v1896 = vmul.f32 %v1192, 0.25
    %v1897 = vmul.f32 %v1737, 0.75
    %v1898 = vmul.f32 %v1738, 0.75
    %v1899 = vmul.f32 %v1739, 0.75
    %v1900 = vmul.f32 %v1740, 0.75
    %v1901 = vmul.f32 %v1741, 0.75
    %v1902 = vmul.f32 %v1742, 0.75
    %v1903 = vmul.f32 %v1743, 0.75
    %v1904 = vmul.f32 %v1744, 0.75
    %v1905 = vmul.f32 %v1745, 0.75
    %v1906 = vmul.f32 %v1746, 0.75
    %v1907 = vmul.f32 %v1747, 0.75
    %v1908 = vmul.f32 %v1748, 0.75
    %v1909 = vmul.f32 %v1749, 0.75
    %v1910 = vmul.f32 %v1750, 0.75
    %v1911 = vmul.f32 %v1751, 0.75
    %v1912 = vmul.f32 %v1752, 0.75
    %v1913 = vmul.f32 %v1753, 0.75
    %v1914 = vmul.f32 %v1754, 0.75
    %v1915 = vmul.f32 %v1755, 0.75
    %v1916 = vmul.f32 %v1756, 0.75
    %v1917 = vmul.f32 %v1757, 0.75
    %v1918 = vmul.f32 %v1758, 0.75
    %v1919 = vmul.f32 %v1759, 0.75
    %v1920 = vmul.f32 %v1760, 0.75
    %v1921 = vmul.f32 %v1761, 0.75
    %v1922 = vmul.f32 %v1762, 0.75
    %v1923 = vmul.f32 %v1763, 0.75
    %v1924 = vmul.f32 %v1764, 0.75
    %v1925 = vmul.f32 %v1765, 0.75
    %v1926 = vmul.f32 %v1766, 0.75
    %v1927 = vmul.f32 %v1767, 0.75
    %v1928 = vmul.f32 %v1768, 0.75
    %v1929 = vadd.f32 %v1865, %v1897
    %v1930 = vadd.f32 %v1866, %v1898
    %v1931 = vadd.f32 %v1867, %v1899
    %v1932 = vadd.f32 %v1868, %v1900
    %v1933 = vadd.f32 %v1869, %v1901
    %v1934 = vadd.f32 %v1870, %v1902
    %v1935 = vadd.f32 %v1871, %v1903
    %v1936 = vadd.f32 %v1872, %v1904
    %v1937 = vadd.f32 %v1873, %v1905
    %v1938 = vadd.f32 %v1874, %v1906
    %v1939 = vadd.f32 %v1875, %v1907
    %v1940 = vadd.f32 %v1876, %v1908
    %v1941 = vadd.f32 %v1877, %v1909
    %v1942 = vadd.f32 %v1878, %v1910
    %v1943 = vadd.f32 %v1879, %v1911
    %v1944 = vadd.f32 %v1880, %v1912
    %v1945 = vadd.f32 %v1881, %v1913
    %v1946 = vadd.f32 %v1882, %v1914
    %v1947 = vadd.f32 %v1883, %v1915
    %v1948 = vadd.f32 %v1884, %v1916
    %v1949 = vadd.f32 %v1885, %v1917
    %v1950 = vadd.f32 %v1886, %v1918
    %v1951 = vadd.f32 %v1887, %v1919
    %v1952 = vadd.f32 %v1888, %v1920
    %v1953 = vadd.f32 %v1889, %v1921
    %v1954 = vadd.f32 %v1890, %v1922
    %v1955 = vadd.f32 %v1891, %v1923
    %v1956 = vadd.f32 %v1892, %v1924
    %v1957 = vadd.f32 %v1893, %v1925
    %v1958 = vadd.f32 %v1894, %v1926
    %v1959 = vadd.f32 %v1895, %v1927
    %v1960 = vadd.f32 %v1896, %v1928
    %v1961 = vmul.f32 %v1929, %v1513
    %v1962 = vmul.f32 %v1930, %v1514
    %v1963 = vmul.f32 %v1931, %v1515
    %v1964 = vmul.f32 %v1932, %v1516
    %v1965 = vmul.f32 %v1933, %v1517
    %v1966 = vmul.f32 %v1934, %v1518
    %v1967 = vmul.f32 %v1935, %v1519
    %v1968 = vmul.f32 %v1936, %v1520
    %v1969 = vmul.f32 %v1937, %v1521
    %v1970 = vmul.f32 %v1938, %v1522
    %v1971 = vmul.f32 %v1939, %v1523
    %v1972 = vmul.f32 %v1940, %v1524
    %v1973 = vmul.f32 %v1941, %v1525
    %v1974 = vmul.f32 %v1942, %v1526
    %v1975 = vmul.f32 %v1943, %v1527
    %v1976 = vmul.f32 %v1944, %v1528
    %v1977 = vmul.f32 %v1945, %v1529
    %v1978 = vmul.f32 %v1946, %v1530
    %v1979 = vmul.f32 %v1947, %v1531
    %v1980 = vmul.f32 %v1948, %v1532
    %v1981 = vmul.f32 %v1949, %v1533
    %v1982 = vmul.f32 %v1950, %v1534
    %v1983 = vmul.f32 %v1951, %v1535
    %v1984 = vmul.f32 %v1952, %v1536
    %v1985 = vmul.f32 %v1953, %v1537
    %v1986 = vmul.f32 %v1954, %v1538
    %v1987 = vmul.f32 %v1955, %v1539
    %v1988 = vmul.f32 %v1956, %v1540
    %v1989 = vmul.f32 %v1957, %v1541
    %v1990 = vmul.f32 %v1958, %v1542
    %v1991 = vmul.f32 %v1959, %v1543
    %v1992 = vmul.f32 %v1960, %v1544
    %v1993 = vmul.f32 %v1961, %v1833
    %v1994 = vmul.f32 %v1962, %v1834
    %v1995 = vmul.f32 %v1963, %v1835
    %v1996 = vmul.f32 %v1964, %v1836
    %v1997 = vmul.f32 %v1965, %v1837
    %v1998 = vmul.f32 %v1966, %v1838
    %v1999 = vmul.f32 %v1967, %v1839
    %v2000 = vmul.f32 %v1968, %v1840
    %v2001 = vmul.f32 %v1969, %v1841
    %v2002 = vmul.f32 %v1970, %v1842
    %v2003 = vmul.f32 %v1971, %v1843
    %v2004 = vmul.f32 %v1972, %v1844
    %v2005 = vmul.f32 %v1973, %v1845
    %v2006 = vmul.f32 %v1974, %v1846
    %v2007 = vmul.f32 %v1975, %v1847
    %v2008 = vmul.f32 %v1976, %v1848
    %v2009 = vmul.f32 %v1977, %v1849
    %v2010 = vmul.f32 %v1978, %v1850
    %v2011 = vmul.f32 %v1979, %v1851
    %v2012 = vmul.f32 %v1980, %v1852
    %v2013 = vmul.f32 %v1981, %v1853
    %v2014 = vmul.f32 %v1982, %v1854
    %v2015 = vmul.f32 %v1983, %v1855
    %v2016 = vmul.f32 %v1984, %v1856
    %v2017 = vmul.f32 %v1985, %v1857
    %v2018 = vmul.f32 %v1986, %v1858
    %v2019 = vmul.f32 %v1987, %v1859
    %v2020 = vmul.f32 %v1988, %v1860
    %v2021 = vmul.f32 %v1989, %v1861
    %v2022 = vmul.f32 %v1990, %v1862
    %v2023 = vmul.f32 %v1991, %v1863
    %v2024 = vmul.f32 %v1992, %v1864
    %v2025 = vmul.f32 %v1993, %v1833
    %v2026 = vmul.f32 %v1994, %v1834
    %v2027 = vmul.f32 %v1995, %v1835
    %v2028 = vmul.f32 %v1996, %v1836
    %v2029 = vmul.f32 %v1997, %v1837
    %v2030 = vmul.f32 %v1998, %v1838
    %v2031 = vmul.f32 %v1999, %v1839
    %v2032 = vmul.f32 %v2000, %v1840
    %v2033 = vmul.f32 %v2001, %v1841
    %v2034 = vmul.f32 %v2002, %v1842
    %v2035 = vmul.f32 %v2003, %v1843
    %v2036 = vmul.f32 %v2004, %v1844
    %v2037 = vmul.f32 %v2005, %v1845
    %v2038 = vmul.f32 %v2006, %v1846
    %v2039 = vmul.f32 %v2007, %v1847
    %v2040 = vmul.f32 %v2008, %v1848
    %v2041 = vmul.f32 %v2009, %v1849
    %v2042 = vmul.f32 %v2010, %v1850
    %v2043 = vmul.f32 %v2011, %v1851
    %v2044 = vmul.f32 %v2012, %v1852
    %v2045 = vmul.f32 %v2013, %v1853
    %v2046 = vmul.f32 %v2014, %v1854
    %v2047 = vmul.f32 %v2015, %v1855
    %v2048 = vmul.f32 %v2016, %v1856
    %v2049 = vmul.f32 %v2017, %v1857
    %v2050 = vmul.f32 %v2018, %v1858
    %v2051 = vmul.f32 %v2019, %v1859
    %v2052 = vmul.f32 %v2020, %v1860
    %v2053 = vmul.f32 %v2021, %v1861
    %v2054 = vmul.f32 %v2022, %v1862
    %v2055 = vmul.f32 %v2023, %v1863
    %v2056 = vmul.f32 %v2024, %v1864
    %v2057 = vld [vmem:[#allocation2] sm:$0xff]
    %v2058 = vld [vmem:[#allocation2 + $0x8] sm:$0xff]
    %v2059 = vld [vmem:[#allocation2 + $0x10] sm:$0xff]
    %v2060 = vld [vmem:[#allocation2 + $0x18] sm:$0xff]
    %v2061 = vadd.f32 %v2025, %v2026
    %v2062 = vadd.f32 %v2061, %v2027
    %v2063 = vadd.f32 %v2062, %v2028
    %v2064 = vadd.f32 %v2063, %v2029
    %v2065 = vadd.f32 %v2064, %v2030
    %v2066 = vadd.f32 %v2065, %v2031
    %v2067 = vadd.f32 %v2066, %v2032
    %2068 = vadd.xlane.f32.xlu0 %v2067
    %v2069 = vpop.xlane.xlu0 %2068
    %v2070 = vadd.f32 %v2033, %v2034
    %v2071 = vadd.f32 %v2070, %v2035
    %v2072 = vadd.f32 %v2071, %v2036
    %v2073 = vadd.f32 %v2072, %v2037
    %v2074 = vadd.f32 %v2073, %v2038
    %v2075 = vadd.f32 %v2074, %v2039
    %v2076 = vadd.f32 %v2075, %v2040
    %2077 = vadd.xlane.f32.xlu0 %v2076
    %v2078 = vpop.xlane.xlu0 %2077
    %v2079 = vadd.f32 %v2041, %v2042
    %v2080 = vadd.f32 %v2079, %v2043
    %v2081 = vadd.f32 %v2080, %v2044
    %v2082 = vadd.f32 %v2081, %v2045
    %v2083 = vadd.f32 %v2082, %v2046
    %v2084 = vadd.f32 %v2083, %v2047
    %v2085 = vadd.f32 %v2084, %v2048
    %2086 = vadd.xlane.f32.xlu0 %v2085
    %v2087 = vpop.xlane.xlu0 %2086
    %v2088 = vadd.f32 %v2049, %v2050
    %v2089 = vadd.f32 %v2088, %v2051
    %v2090 = vadd.f32 %v2089, %v2052
    %v2091 = vadd.f32 %v2090, %v2053
    %v2092 = vadd.f32 %v2091, %v2054
    %v2093 = vadd.f32 %v2092, %v2055
    %v2094 = vadd.f32 %v2093, %v2056
    %2095 = vadd.xlane.f32.xlu0 %v2094
    %v2096 = vpop.xlane.xlu0 %2095
    %v2097 = vadd.f32 %v2057, %v2069
    %v2098 = vadd.f32 %v2058, %v2078
    %v2099 = vadd.f32 %v2059, %v2087
    %v2100 = vadd.f32 %v2060, %v2096
    %vm2101 = vcmask 7168
    %2102 = vst.msk [vmem:[#allocation2] sm:$0xff] %vm2101, %v2097
    %2103 = vst.msk [vmem:[#allocation2 + $0x8] sm:$0xff] %vm2101, %v2098
    %2104 = vst.msk [vmem:[#allocation2 + $0x10] sm:$0xff] %vm2101, %v2099
    %2105 = vst.msk [vmem:[#allocation2 + $0x18] sm:$0xff] %vm2101, %v2100
    %v2106 = vadd.f32 %v1673, %v1674
    %v2107 = vadd.f32 %v2106, %v1675
    %v2108 = vadd.f32 %v2107, %v1676
    %v2109 = vadd.f32 %v2108, %v1677
    %v2110 = vadd.f32 %v2109, %v1678
    %v2111 = vadd.f32 %v2110, %v1679
    %v2112 = vadd.f32 %v2111, %v1680
    %2113 = vadd.xlane.f32.xlu0 %v2112
    %v2114 = vpop.xlane.xlu0 %2113
    %v2115 = vadd.f32 %v1681, %v1682
    %v2116 = vadd.f32 %v2115, %v1683
    %v2117 = vadd.f32 %v2116, %v1684
    %v2118 = vadd.f32 %v2117, %v1685
    %v2119 = vadd.f32 %v2118, %v1686
    %v2120 = vadd.f32 %v2119, %v1687
    %v2121 = vadd.f32 %v2120, %v1688
    %2122 = vadd.xlane.f32.xlu0 %v2121
    %v2123 = vpop.xlane.xlu0 %2122
    %v2124 = vadd.f32 %v1689, %v1690
    %v2125 = vadd.f32 %v2124, %v1691
    %v2126 = vadd.f32 %v2125, %v1692
    %v2127 = vadd.f32 %v2126, %v1693
    %v2128 = vadd.f32 %v2127, %v1694
    %v2129 = vadd.f32 %v2128, %v1695
    %v2130 = vadd.f32 %v2129, %v1696
    %2131 = vadd.xlane.f32.xlu0 %v2130
    %v2132 = vpop.xlane.xlu0 %2131
    %v2133 = vadd.f32 %v1697, %v1698
    %v2134 = vadd.f32 %v2133, %v1699
    %v2135 = vadd.f32 %v2134, %v1700
    %v2136 = vadd.f32 %v2135, %v1701
    %v2137 = vadd.f32 %v2136, %v1702
    %v2138 = vadd.f32 %v2137, %v1703
    %v2139 = vadd.f32 %v2138, %v1704
    %2140 = vadd.xlane.f32.xlu0 %v2139
    %v2141 = vpop.xlane.xlu0 %2140
    %v2142 = vadd.f32 %v1641, %v1161
    %v2143 = vadd.f32 %v1642, %v1162
    %v2144 = vadd.f32 %v1643, %v1163
    %v2145 = vadd.f32 %v1644, %v1164
    %v2146 = vadd.f32 %v1645, %v1165
    %v2147 = vadd.f32 %v1646, %v1166
    %v2148 = vadd.f32 %v1647, %v1167
    %v2149 = vadd.f32 %v1648, %v1168
    %v2150 = vadd.f32 %v1649, %v1169
    %v2151 = vadd.f32 %v1650, %v1170
    %v2152 = vadd.f32 %v1651, %v1171
    %v2153 = vadd.f32 %v1652, %v1172
    %v2154 = vadd.f32 %v1653, %v1173
    %v2155 = vadd.f32 %v1654, %v1174
    %v2156 = vadd.f32 %v1655, %v1175
    %v2157 = vadd.f32 %v1656, %v1176
    %v2158 = vadd.f32 %v1657, %v1177
    %v2159 = vadd.f32 %v1658, %v1178
    %v2160 = vadd.f32 %v1659, %v1179
    %v2161 = vadd.f32 %v1660, %v1180
    %v2162 = vadd.f32 %v1661, %v1181
    %v2163 = vadd.f32 %v1662, %v1182
    %v2164 = vadd.f32 %v1663, %v1183
    %v2165 = vadd.f32 %v1664, %v1184
    %v2166 = vadd.f32 %v1665, %v1185
    %v2167 = vadd.f32 %v1666, %v1186
    %v2168 = vadd.f32 %v1667, %v1187
    %v2169 = vadd.f32 %v1668, %v1188
    %v2170 = vadd.f32 %v1669, %v1189
    %v2171 = vadd.f32 %v1670, %v1190
    %v2172 = vadd.f32 %v1671, %v1191
    %v2173 = vadd.f32 %v1672, %v1192
    %v2174 = vadd.f32 %v2142, %v2143
    %v2175 = vadd.f32 %v2174, %v2144
    %v2176 = vadd.f32 %v2175, %v2145
    %v2177 = vadd.f32 %v2176, %v2146
    %v2178 = vadd.f32 %v2177, %v2147
    %v2179 = vadd.f32 %v2178, %v2148
    %v2180 = vadd.f32 %v2179, %v2149
    %2181 = vadd.xlane.f32.xlu0 %v2180
    %v2182 = vpop.xlane.xlu0 %2181
    %v2183 = vadd.f32 %v2150, %v2151
    %v2184 = vadd.f32 %v2183, %v2152
    %v2185 = vadd.f32 %v2184, %v2153
    %v2186 = vadd.f32 %v2185, %v2154
    %v2187 = vadd.f32 %v2186, %v2155
    %v2188 = vadd.f32 %v2187, %v2156
    %v2189 = vadd.f32 %v2188, %v2157
    %2190 = vadd.xlane.f32.xlu0 %v2189
    %v2191 = vpop.xlane.xlu0 %2190
    %v2192 = vadd.f32 %v2158, %v2159
    %v2193 = vadd.f32 %v2192, %v2160
    %v2194 = vadd.f32 %v2193, %v2161
    %v2195 = vadd.f32 %v2194, %v2162
    %v2196 = vadd.f32 %v2195, %v2163
    %v2197 = vadd.f32 %v2196, %v2164
    %v2198 = vadd.f32 %v2197, %v2165
    %2199 = vadd.xlane.f32.xlu0 %v2198
    %v2200 = vpop.xlane.xlu0 %2199
    %v2201 = vadd.f32 %v2166, %v2167
    %v2202 = vadd.f32 %v2201, %v2168
    %v2203 = vadd.f32 %v2202, %v2169
    %v2204 = vadd.f32 %v2203, %v2170
    %v2205 = vadd.f32 %v2204, %v2171
    %v2206 = vadd.f32 %v2205, %v2172
    %v2207 = vadd.f32 %v2206, %v2173
    %2208 = vadd.xlane.f32.xlu0 %v2207
    %v2209 = vpop.xlane.xlu0 %2208
    %v2210 = vld [vmem:[#allocation3] sm:$0xff]
    %v2211 = vld [vmem:[#allocation3 + $0x8] sm:$0xff]
    %v2212 = vld [vmem:[#allocation3 + $0x10] sm:$0xff]
    %v2213 = vld [vmem:[#allocation3 + $0x18] sm:$0xff]
    %v2214 = vmul.f32 %v2114, 2.0
    %v2215 = vmul.f32 %v2123, 2.0
    %v2216 = vmul.f32 %v2132, 2.0
    %v2217 = vmul.f32 %v2141, 2.0
    %v2218 = vadd.f32 %v2214, 1.0
    %v2219 = vadd.f32 %v2215, 1.0
    %v2220 = vadd.f32 %v2216, 1.0
    %v2221 = vadd.f32 %v2217, 1.0
    %v2222 = vadd.f32 %v2182, 1.0
    %v2223 = vadd.f32 %v2191, 1.0
    %v2224 = vadd.f32 %v2200, 1.0
    %v2225 = vadd.f32 %v2209, 1.0
    %v2226 = vrcp.pop %v2222
    %v2227 = vmul.f32 %v2218, %v2226
    %v2228 = vrcp.pop %v2223
    %v2229 = vmul.f32 %v2219, %v2228
    %v2230 = vrcp.pop %v2224
    %v2231 = vmul.f32 %v2220, %v2230
    %v2232 = vrcp.pop %v2225
    %v2233 = vmul.f32 %v2221, %v2232
    %v2234 = vsub.f32 1.0, %v2227
    %v2235 = vsub.f32 1.0, %v2229
    %v2236 = vsub.f32 1.0, %v2231
    %v2237 = vsub.f32 1.0, %v2233
    %v2238 = vadd.f32 %v2210, %v2234
    %v2239 = vadd.f32 %v2211, %v2235
    %v2240 = vadd.f32 %v2212, %v2236
    %v2241 = vadd.f32 %v2213, %v2237
    %2242 = vst.msk [vmem:[#allocation3] sm:$0xff] %vm2101, %v2238
    %2243 = vst.msk [vmem:[#allocation3 + $0x8] sm:$0xff] %vm2101, %v2239
    %2244 = vst.msk [vmem:[#allocation3 + $0x10] sm:$0xff] %vm2101, %v2240
    %2245 = vst.msk [vmem:[#allocation3 + $0x18] sm:$0xff] %vm2101, %v2241
    // Predicated region
    $region38: #{tpu_custom_call.1} parent=1 // pred_check
      %p2246 = pneg %p64
    $region39: #{tpu_custom_call.1} parent=1 // pred_check_branch
      %2248 = sbr.rel (%p2246) target = $region41
    $region40: #{tpu_custom_call.1} parent=1 // pred_region
      %v2249 = vld [vmem:[#allocation2] sm:$0xff]
      %v2250 = vld [vmem:[#allocation2 + $0x8] sm:$0xff]
      %v2251 = vld [vmem:[#allocation2 + $0x10] sm:$0xff]
      %v2252 = vld [vmem:[#allocation2 + $0x18] sm:$0xff]
      %v2253 = vsel %vm2101, %v2249, 0.0
      %v2254 = vsel %vm2101, %v2250, 0.0
      %v2255 = vadd.f32 %v2253, %v2254
      %v2256 = vsel %vm2101, %v2251, 0.0
      %v2257 = vadd.f32 %v2255, %v2256
      %v2258 = vsel %vm2101, %v2252, 0.0
      %v2259 = vadd.f32 %v2257, %v2258
      %2260 = vadd.xlane.f32.xlu0 %v2259
      %v2261 = vpop.xlane.xlu0 %2260
      %v2262 = vrot.slane %v2261, 4
      %v2263 = vadd.f32 %v2261, %v2262
      %v2264 = vrot.slane %v2263, 2
      %v2265 = vadd.f32 %v2263, %v2264
      %v2266 = vrot.slane %v2265, 1
      %v2267 = vadd.f32 %v2265, %v2266
      %s2268 = vtos %v2267
      %s2269 = smul.f32 %s2268, 0.00012207031
      %s2270 = scalar_lea.smem [#allocation10], 0
      %2271 = sst [smem:[%s2270]] %s2269
      %v2272 = vld [vmem:[#allocation3] sm:$0xff]
      %v2273 = vld [vmem:[#allocation3 + $0x8] sm:$0xff]
      %v2274 = vld [vmem:[#allocation3 + $0x10] sm:$0xff]
      %v2275 = vld [vmem:[#allocation3 + $0x18] sm:$0xff]
      %v2276 = vsel %vm2101, %v2272, 0.0
      %v2277 = vsel %vm2101, %v2273, 0.0
      %v2278 = vadd.f32 %v2276, %v2277
      %v2279 = vsel %vm2101, %v2274, 0.0
      %v2280 = vadd.f32 %v2278, %v2279
      %v2281 = vsel %vm2101, %v2275, 0.0
      %v2282 = vadd.f32 %v2280, %v2281
      %2283 = vadd.xlane.f32.xlu0 %v2282
      %v2284 = vpop.xlane.xlu0 %2283
      %v2285 = vrot.slane %v2284, 4
      %v2286 = vadd.f32 %v2284, %v2285
      %v2287 = vrot.slane %v2286, 2
      %v2288 = vadd.f32 %v2286, %v2287
      %v2289 = vrot.slane %v2288, 1
      %v2290 = vadd.f32 %v2288, %v2289
      %s2291 = vtos %v2290
      %s2292 = smul.f32 %s2291, 0.125
      %s2293 = scalar_lea.smem [#allocation11], 0
      %2294 = sst [smem:[%s2293]] %s2292
    $region41: #{tpu_custom_call.1} parent=1 // pred_fallthru
      _
    // Predicated region
    $region42: #{tpu_custom_call.1} parent=1 // pred_check
      _
    $region43: #{tpu_custom_call.1} parent=1 // pred_check_branch
      %2296 = sbr.rel (0) target = $region45
    $region44: #{tpu_custom_call.1} parent=1 // pred_region
      %s2298 = ssub.s32 16, 16
      %2299 = vsyncadd [#allocation6], %s2298
      %2302 = dma.smem_to_hbm [#allocation10], 16, %s5, [#allocation6]
    $region45: #{tpu_custom_call.1} parent=1 // pred_fallthru
      _
    // Predicated region
    $region46: #{tpu_custom_call.1} parent=1 // pred_check
      _
    $region47: #{tpu_custom_call.1} parent=1 // pred_check_branch
      %2304 = sbr.rel (0) target = $region49
    $region48: #{tpu_custom_call.1} parent=1 // pred_region
      %s2306 = ssub.s32 16, 16
      %2307 = vsyncadd [#allocation12], %s2306
      %2310 = dma.smem_to_hbm [#allocation11], 16, %s6, [#allocation12]
    $region49: #{tpu_custom_call.1} parent=1 // pred_fallthru
      _
    // Predicated region
    $region50: #{tpu_custom_call.1} parent=1 // pred_check
      _
    $region51: #{tpu_custom_call.1} parent=1 // pred_check_branch
      %2312 = sbr.rel (0) target = $region53
    $region52: #{tpu_custom_call.1} parent=1 // pred_region
      %s2314 = ssub.s32 16, 16
      %2315 = vsyncadd [#allocation12], %s2314
      %2318 = dma.smem_to_hbm [#allocation13], 16, %s7, [#allocation12]
    $region53: #{tpu_custom_call.1} parent=1 // pred_fallthru
      _
    // Predicated region
    $region54: #{tpu_custom_call.1} parent=1 // pred_check
      _
    $region55: #{tpu_custom_call.1} parent=1 // pred_check_branch
      %2320 = sbr.rel (0) target = $region57
    $region56: #{tpu_custom_call.1} parent=1 // pred_region
      %2321 = dma.done [#allocation6], 16
    $region57: #{tpu_custom_call.1} parent=1 // pred_fallthru
      _
    // Predicated region
    $region58: #{tpu_custom_call.1} parent=1 // pred_check
      _
    $region59: #{tpu_custom_call.1} parent=1 // pred_check_branch
      %2323 = sbr.rel (0) target = $region61
    $region60: #{tpu_custom_call.1} parent=1 // pred_region
      %2324 = dma.done [#allocation12], 16
    $region61: #{tpu_custom_call.1} parent=1 // pred_fallthru
      _
    // Predicated region
    $region62: #{tpu_custom_call.1} parent=1 // pred_check
      _
    $region63: #{tpu_custom_call.1} parent=1 // pred_check_branch
      %2326 = sbr.rel (0) target = $region65
    $region64: #{tpu_custom_call.1} parent=1 // pred_region
      %2327 = dma.done [#allocation12], 16
    $region65: #{tpu_custom_call.1} parent=1 // pred_fallthru
      _
    %2328 = sfence
    %2329 = vsyncpa [#allocation5], 1
    %2330 = vsyncpa [#allocation8], 1
    %2331 = vsyncpa [#allocation6], 1
    %2332 = vsyncpa [#allocation12], 1

</llo_original>
